<compile_context>
chip_gen: v5e
topology: v5e:2x2
jax: 0.10.0
libtpu: 0.0.40
codegen_flags: <defaults>
</compile_context>

<pallas_src>
import functools

import jax
import jax.numpy as jnp
from jax import lax
from jax.experimental import pallas as pl
from jax.experimental.pallas import tpu as pltpu


_NEG_INIT = -1e30  # finite "minus infinity" (avoids NaN from -inf - -inf)


def _round_up(x, m):
    return (x + m - 1) // m * m


def _cdiv(a, b):
    return (a + b - 1) // b


def _choose_tile(total, budget):
    """total: multiple of 128.  Returns (tile, n_tiles) with tile a multiple of
    128, n_tiles * tile >= total and padding (n_tiles*tile - total) < tile, so
    padded rows/cols are always confined to the last tile."""
    budget = max(128, (budget // 128) * 128)
    n = _cdiv(total, budget)
    tile = _round_up(_cdiv(total, n), 128)
    tile = min(tile, total)
    n = _cdiv(total, tile)          # recompute => pad < tile guaranteed
    return tile, n


def _scl_kernel(feat_ref, featT_ref, lab_col_ref, lab_row_ref, out_ref,
                m_acc, s_acc, c_acc, d_acc, *,
                scale, batch, tm, tk, pad_cols):
    i = pl.program_id(0)                  # anchor-row tile      ("parallel")
    k = pl.program_id(1)                  # contrast-column tile ("arbitrary")
    nk = pl.num_programs(1)
    n_blk = tk // 128

    @pl.when(k == 0)
    def _init():
        m_acc[...] = jnp.full_like(m_acc, _NEG_INIT)
        s_acc[...] = jnp.zeros_like(s_acc)
        c_acc[...] = jnp.zeros_like(c_acc)
        d_acc[...] = jnp.zeros_like(d_acc)

    # Similarity scores for this tile; 1/temperature was folded into the LHS by
    # the wrapper, so the MXU output is already the scaled logits.
    scores = jnp.dot(feat_ref[...], featT_ref[...],
                     preferred_element_type=jnp.float32)            # [tm, tk]

    row0 = i * tm
    col0 = k * tk

    # Hoisted broadcasts (JAX does not CSE broadcast_in_dim inside loops).
    lab_rows = jnp.broadcast_to(lab_col_ref[...], (tm, 128))        # [tm, 128]
    lab_cols = lab_row_ref[...]                                     # [1, tk]

    def update(mask_diag, mask_pad):
        if mask_diag or mask_pad:
            row_idx = row0 + lax.broadcasted_iota(jnp.int32, (tm, 128), 0)
            lane_iota = lax.broadcasted_iota(jnp.int32, (tm, 128), 1)

        # ---- pass 1: lane-local running max (diag included, pad excluded) --
        m_old = m_acc[...]
        m_new = m_old
        for j in range(n_blk):
            blk = scores[:, j * 128:(j + 1) * 128]
            if mask_pad:
                col_idx = (col0 + j * 128) + lane_iota
                blk = jnp.where(col_idx < batch, blk, _NEG_INIT)
            m_new = jnp.maximum(m_new, blk)

        alpha = jnp.exp(m_old - m_new)
        s_new = alpha * s_acc[...]
        c_new = c_acc[...]
        d_new = d_acc[...]
        one = jnp.float32(1.0)
        zero = jnp.float32(0.0)

        # ---- pass 2: exp-sum (diag & pad excluded) + positive-pair sums -----
        for j in range(n_blk):
            sl = slice(j * 128, (j + 1) * 128)
            blk = scores[:, sl]
            eq = lab_rows == lab_cols[:, sl]
            e = jnp.exp(blk - m_new)
            if mask_diag or mask_pad:
                col_idx = (col0 + j * 128) + lane_iota
                keep = None
                if mask_diag:
                    keep = row_idx != col_idx
                if mask_pad:
                    valid = col_idx < batch
                    keep = valid if keep is None else jnp.logical_and(keep, valid)
                e = jnp.where(keep, e, zero)
                posf = jnp.where(jnp.logical_and(eq, keep), one, zero)
            else:
                posf = jnp.where(eq, one, zero)
            s_new = s_new + e
            c_new = c_new + posf * blk
            d_new = d_new + posf

        m_acc[...] = m_new
        s_acc[...] = s_new
        c_acc[...] = c_new
        d_acc[...] = d_new

    has_diag = jnp.logical_and(row0 < col0 + tk, col0 < row0 + tm)
    is_last = k == nk - 1
    if pad_cols:
        not_last = jnp.logical_not(is_last)
        pl.when(jnp.logical_and(jnp.logical_not(has_diag), not_last))(
            lambda: update(False, False))                       # fast path
        pl.when(jnp.logical_and(has_diag, not_last))(
            lambda: update(True, False))                        # diag only
        pl.when(is_last)(lambda: update(True, True))            # last tile: diag+pad
    else:
        pl.when(jnp.logical_not(has_diag))(lambda: update(False, False))
        pl.when(has_diag)(lambda: update(True, False))

    @pl.when(is_last)
    def _finalize():
        m_lane = m_acc[...]                                     # [tm, 128]
        m_row = jnp.max(m_lane, axis=1, keepdims=True)          # single XLU reduce
        s_row = jnp.sum(s_acc[...] * jnp.exp(m_lane - m_row), axis=1, keepdims=True)
        c_row = jnp.sum(c_acc[...], axis=1, keepdims=True)
        d_row = jnp.sum(d_acc[...], axis=1, keepdims=True)
        d_safe = jnp.where(d_row < 1e-6, jnp.float32(1.0), d_row)
        mean_log_prob_pos = (c_row - d_row * m_row
                             - d_row * jnp.log(s_row + 1e-6)) / d_safe
        loss = scale * mean_log_prob_pos                        # [tm, 1]
        # Lane-dense slab: full unmasked stores; wrapper reads lane 0.
        out_ref[...] = jnp.broadcast_to(loss, out_ref.shape)


def scl_loss(features, labels, temperature=0.5, base_temperature=0.5,
             *, max_tm=512, max_tk=1024):
    """Pallas TPU implementation of SCL.forward.

    features: [B, D] float (bf16 or f32) array
    labels:   [B]    int array
    returns:  [B]    float32 per-anchor loss (matches the PyTorch module)
    """
    B, D = features.shape
    if labels.shape[0] != B:
        raise ValueError('Num of labels does not match num of features')

    if features.dtype not in (jnp.bfloat16, jnp.float32):
        features = features.astype(jnp.float32)
    dtype = features.dtype
    itemsize = jnp.dtype(dtype).itemsize

    inv_temp = 1.0 / float(temperature)
    scale = -(float(temperature) / float(base_temperature))

    D_pad = _round_up(D, 128)
    B_128 = _round_up(B, 128)

    # ---- generation-aware VMEM budget ---------------------------------------
    try:
        vmem_cap = int(pltpu.get_tpu_info().vmem_capacity_bytes)
    except Exception:
        vmem_cap = 64 << 20                       # conservative (v7x-sized) fallback
    vmem_budget = max(12 << 20, min(vmem_cap // 2 - (4 << 20), 44 << 20))

    # ---- tiling --------------------------------------------------------------
    # Column tile: cap the double-buffered RHS feature tile at ~1/3 of budget.
    tk_cap = max(128, ((vmem_budget // 3) // (2 * D_pad * itemsize)) // 128 * 128)
    tk, n_col_tiles = _choose_tile(B_128, min(max_tk, tk_cap, B_128))
    B_cols = tk * n_col_tiles

    # Row tile: primary knob (raises arithmetic intensity / cuts featT re-streaming).
    rhs_bytes = 2 * D_pad * tk * itemsize
    per_tm = (2 * D_pad * itemsize            # LHS tile (double-buffered)
              + 8 * tk * 4                    # live [tm, tk]-scaled f32 temporaries
              + 6 * 128 * 4)                  # accumulators + output slab
    tm_cap = max(128, ((vmem_budget - rhs_bytes) // per_tm) // 128 * 128)
    tm_budget = min(max_tm, tm_cap, B_128)
    if B_128 >= 256:
        # Keep >= 2 row tiles so the "parallel" axis spans both v7x TensorCores.
        tm_budget = min(tm_budget, max(128, (B_128 // 2) // 128 * 128))
    tm, n_row_tiles = _choose_tile(B_128, tm_budget)
    B_rows = tm * n_row_tiles

    grid = (n_row_tiles, n_col_tiles)
    pad_cols = B_cols != B
    out_lanes = 128

    # ---- operands ------------------------------------------------------------
    feat32 = features.astype(jnp.float32)
    # Fold 1/temperature into the LHS once (fuses with pad/cast; exact for
    # power-of-two temperatures; saves a per-step [tm,tk] scale pass in-kernel).
    lhs = jnp.pad((feat32 * inv_temp).astype(dtype),
                  ((0, B_rows - B), (0, D_pad - D)))
    rhs = jnp.pad(features, ((0, B_cols - B), (0, D_pad - D))).T   # [D_pad, B_cols]
    lab = labels.reshape(-1).astype(jnp.int32)
    # -1 pad sentinel: padded columns are excluded by the col<batch mask, so a
    # genuine user label of -1 cannot collide with padding.
    lab_col = jnp.pad(lab, (0, B_rows - B), constant_values=-1).reshape(B_rows, 1)
    lab_row = jnp.pad(lab, (0, B_cols - B), constant_values=-1).reshape(1, B_cols)

    kernel = functools.partial(
        _scl_kernel, scale=scale, batch=B, tm=tm, tk=tk, pad_cols=pad_cols)

    # ---- VMEM limit & cost estimate ------------------------------------------
    est_vmem = (2 * tm * D_pad * itemsize          # LHS tiles
                + rhs_bytes                        # RHS tiles
                + 2 * tm * out_lanes * 4           # output block
                + 4 * tm * 128 * 4                 # lane-local accumulators
                + 2 * (tm * 128 + 8 * tk) * 4      # label tiles (layout padded)
                + 6 * tm * tk * 4)                 # in-flight [tm,tk] f32 temps
    vmem_limit = int(min(max(est_vmem * 3 // 2 + (2 << 20), 16 << 20),
                         vmem_budget + (8 << 20)))

    cost = pl.CostEstimate(
        flops=2 * B_rows * B_cols * D_pad,
        transcendentals=int(1.2 * B_rows * B_cols),
        bytes_accessed=int(B_rows * D_pad * itemsize
                           + n_row_tiles * B_cols * D_pad * itemsize
                           + B_rows * out_lanes * 4
                           + (B_rows + B_cols) * 4),
    )

    out = pl.pallas_call(
        kernel,
        out_shape=jax.ShapeDtypeStruct((B_rows, out_lanes), jnp.float32),
        grid_spec=pltpu.PrefetchScalarGridSpec(
            num_scalar_prefetch=0,
            grid=grid,
            in_specs=[
                pl.BlockSpec((tm, D_pad), lambda i, k: (i, 0)),   # scaled anchors
                pl.BlockSpec((D_pad, tk), lambda i, k: (0, k)),   # contrast (pre-T)
                pl.BlockSpec((tm, 1), lambda i, k: (i, 0)),       # row labels
                pl.BlockSpec((1, tk), lambda i, k: (0, k)),       # col labels
            ],
            out_specs=pl.BlockSpec((tm, out_lanes), lambda i, k: (i, 0)),
            scratch_shapes=[pltpu.VMEM((tm, 128), jnp.float32) for _ in range(4)],
        ),
        compiler_params=pltpu.CompilerParams(
            dimension_semantics=("parallel", "arbitrary"),
            vmem_limit_bytes=vmem_limit,
        ),
        cost_estimate=cost,
    )(lhs, rhs, lab_col, lab_row)

    return out[:B, 0]


def _scl_loss_ref(features, labels, temperature=0.5, base_temperature=0.5):
    """Pure-JAX reference mirroring the PyTorch code, for verification."""
    features = features.astype(jnp.float32)
    B = features.shape[0]
    labels = labels.reshape(-1, 1)
    mask = (labels == labels.T).astype(jnp.float32)
    dots = jnp.matmul(features, features.T) / temperature
    logits_max = jnp.max(dots, axis=1, keepdims=True)
    logits = dots - logits_max
    logits_mask = 1.0 - jnp.eye(B, dtype=jnp.float32)
    mask = mask * logits_mask
    exp_logits = jnp.exp(logits) * logits_mask
    log_prob = logits - jnp.log(jnp.sum(exp_logits, 1, keepdims=True) + 1e-6)
    mpp = jnp.sum(mask, axis=1)
    mpp = jnp.where(mpp < 1e-6, 1.0, mpp)
    mean_log_prob_pos = jnp.sum(mask * log_prob, axis=1) / mpp
    return -(temperature / base_temperature) * mean_log_prob_pos


if __name__ == "__main__":
    key = jax.random.PRNGKey(0)
    k1, k2, k3, k4, k5, k6 = jax.random.split(key, 6)

    # --- test 1: small f32 problem (B=8, D=32), single-tile grid -------------
    B, D = 8, 32
    feats = jax.random.normal(k1, (B, D), dtype=jnp.float32)
    feats = feats / jnp.linalg.norm(feats, axis=1, keepdims=True)
    labels = jax.random.randint(k2, (B,), 0, 3, dtype=jnp.int32)

    loss = jax.block_until_ready(scl_loss(feats, labels, 0.5, 0.5))
    loss_ref = _scl_loss_ref(feats, labels, 0.5, 0.5)
    assert loss.shape == (B,)
    assert jnp.allclose(loss, loss_ref, atol=1e-4, rtol=1e-4), (loss, loss_ref)

    # --- test 2: multi-tile grid (2x2) + column/row padding -------------------
    B2, D2 = 130, 64
    feats2 = jax.random.normal(k3, (B2, D2), dtype=jnp.float32)
    feats2 = feats2 / jnp.linalg.norm(feats2, axis=1, keepdims=True)
    labels2 = jax.random.randint(k4, (B2,), 0, 5, dtype=jnp.int32)

    loss2 = jax.block_until_ready(
        scl_loss(feats2, labels2, 0.5, 0.5, max_tm=128, max_tk=128))
    loss2_ref = _scl_loss_ref(feats2, labels2, 0.5, 0.5)
    assert loss2.shape == (B2,)
    assert jnp.allclose(loss2, loss2_ref, atol=1e-4, rtol=1e-4), (loss2, loss2_ref)

    # --- test 3: bf16 feature path (native MXU dtype, f32 accumulation) -------
    feats_bf16 = feats2.astype(jnp.bfloat16)
    loss_bf = jax.block_until_ready(scl_loss(feats_bf16, labels2, 0.5, 0.5))
    loss_bf_ref = _scl_loss_ref(feats_bf16.astype(jnp.float32), labels2, 0.5, 0.5)
    assert jnp.allclose(loss_bf, loss_bf_ref, atol=5e-3, rtol=5e-3), (
        loss_bf, loss_bf_ref)

    # --- test 4: 3x3 grid exercising fast / diag-only / last(pad) branches ----
    B3, D3 = 300, 96
    feats3 = jax.random.normal(k5, (B3, D3), dtype=jnp.float32)
    feats3 = feats3 / jnp.linalg.norm(feats3, axis=1, keepdims=True)
    labels3 = jax.random.randint(k6, (B3,), 0, 7, dtype=jnp.int32)

    loss3 = jax.block_until_ready(
        scl_loss(feats3, labels3, 0.5, 0.5, max_tm=128, max_tk=128))
    loss3_ref = _scl_loss_ref(feats3, labels3, 0.5, 0.5)
    assert loss3.shape == (B3,)
    assert jnp.allclose(loss3, loss3_ref, atol=1e-4, rtol=1e-4), (loss3, loss3_ref)

    print("KERNEL_OK")
</pallas_src>

<mosaic_0001>
module attributes {stable_mosaic.version = 11 : i64} {
  func.func @_scl_kernel(%arg0: i32, %arg1: i32, %arg2: memref<128x128xf32, #tpu.memory_space<vmem>>, %arg3: memref<128x128xf32, #tpu.memory_space<vmem>>, %arg4: memref<128x1xi32, #tpu.memory_space<vmem>>, %arg5: memref<1x128xi32, #tpu.memory_space<vmem>>, %arg6: memref<128x128xf32, #tpu.memory_space<vmem>>, %arg7: memref<128x128xf32, #tpu.memory_space<vmem>>, %arg8: memref<128x128xf32, #tpu.memory_space<vmem>>, %arg9: memref<128x128xf32, #tpu.memory_space<vmem>>, %arg10: memref<128x128xf32, #tpu.memory_space<vmem>>) attributes {dimension_semantics = [#tpu.dimension_semantics<parallel>, #tpu.dimension_semantics<arbitrary>], iteration_bounds = array<i64: 1, 1>, scalar_prefetch = 0 : i64, scratch_operands = 4 : i64, tpu.core_type = #tpu.core_type<tc>, window_params = [{transform_indices = @transform_0, window_bounds = array<i64: 128, 128>}, {transform_indices = @transform_1, window_bounds = array<i64: 128, 128>}, {transform_indices = @transform_2, window_bounds = array<i64: 128, 1>}, {transform_indices = @transform_3, window_bounds = array<i64: 1, 128>}, {transform_indices = @transform_4, window_bounds = array<i64: 128, 128>}]} {
    %c0_i32 = arith.constant 0 : i32
    %0 = arith.cmpi eq, %arg1, %c0_i32 : i32
    %1 = arith.extui %0 : i1 to i32
    %c0_i32_0 = arith.constant 0 : i32
    %2 = arith.cmpi ne, %1, %c0_i32_0 : i32
    scf.if %2 {
      %cst_17 = arith.constant -1.000000e+30 : f32
      %30 = vector.broadcast %cst_17 : f32 to vector<128x128xf32>
      %c0_18 = arith.constant 0 : index
      %c0_19 = arith.constant 0 : index
      %31 = vector.load %arg7[%c0_18, %c0_19] : memref<128x128xf32, #tpu.memory_space<vmem>>, vector<128x128xf32>
      tpu.vector_store %arg7[%c0_18, %c0_19], %30 {strides = array<i32>} : memref<128x128xf32, #tpu.memory_space<vmem>>, vector<128x128xf32>,
      %cst_20 = arith.constant 0.000000e+00 : f32
      %32 = vector.broadcast %cst_20 : f32 to vector<128x128xf32>
      %c0_21 = arith.constant 0 : index
      %c0_22 = arith.constant 0 : index
      %33 = vector.load %arg8[%c0_21, %c0_22] : memref<128x128xf32, #tpu.memory_space<vmem>>, vector<128x128xf32>
      tpu.vector_store %arg8[%c0_21, %c0_22], %32 {strides = array<i32>} : memref<128x128xf32, #tpu.memory_space<vmem>>, vector<128x128xf32>,
      %cst_23 = arith.constant 0.000000e+00 : f32
      %34 = vector.broadcast %cst_23 : f32 to vector<128x128xf32>
      %c0_24 = arith.constant 0 : index
      %c0_25 = arith.constant 0 : index
      %35 = vector.load %arg9[%c0_24, %c0_25] : memref<128x128xf32, #tpu.memory_space<vmem>>, vector<128x128xf32>
      tpu.vector_store %arg9[%c0_24, %c0_25], %34 {strides = array<i32>} : memref<128x128xf32, #tpu.memory_space<vmem>>, vector<128x128xf32>,
      %cst_26 = arith.constant 0.000000e+00 : f32
      %36 = vector.broadcast %cst_26 : f32 to vector<128x128xf32>
      %c0_27 = arith.constant 0 : index
      %c0_28 = arith.constant 0 : index
      %37 = vector.load %arg10[%c0_27, %c0_28] : memref<128x128xf32, #tpu.memory_space<vmem>>, vector<128x128xf32>
      tpu.vector_store %arg10[%c0_27, %c0_28], %36 {strides = array<i32>} : memref<128x128xf32, #tpu.memory_space<vmem>>, vector<128x128xf32>,
    } else {
    }
    %c0 = arith.constant 0 : index
    %c0_1 = arith.constant 0 : index
    %3 = vector.load %arg2[%c0, %c0_1] : memref<128x128xf32, #tpu.memory_space<vmem>>, vector<128x128xf32>
    %c0_2 = arith.constant 0 : index
    %c0_3 = arith.constant 0 : index
    %4 = vector.load %arg3[%c0_2, %c0_3] : memref<128x128xf32, #tpu.memory_space<vmem>>, vector<128x128xf32>
    %cst = arith.constant dense<0.000000e+00> : vector<128x128xf32>
    %5 = tpu.matmul %3, %4, %cst {dimension_numbers = #tpu.dot_dimension_numbers<[1], [0], [0], [1], [0, 0, 1, 1], [], []>} : vector<128x128xf32>, vector<128x128xf32>, vector<128x128xf32> -> vector<128x128xf32>
    %c128_i32 = arith.constant 128 : i32
    %6 = arith.muli %arg0, %c128_i32 : i32
    %c128_i32_4 = arith.constant 128 : i32
    %7 = arith.muli %arg1, %c128_i32_4 : i32
    %c0_5 = arith.constant 0 : index
    %c0_6 = arith.constant 0 : index
    %8 = vector.load %arg4[%c0_5, %c0_6] : memref<128x1xi32, #tpu.memory_space<vmem>>, vector<128x1xi32>
    %9 = vector.shape_cast %8 : vector<128x1xi32> to vector<128x1xi32>
    %10 = vector.broadcast %9 : vector<128x1xi32> to vector<128x128xi32>
    %c0_7 = arith.constant 0 : index
    %c0_8 = arith.constant 0 : index
    %11 = vector.load %arg5[%c0_7, %c0_8] : memref<1x128xi32, #tpu.memory_space<vmem>>, vector<1x128xi32>
    %c128_i32_9 = arith.constant 128 : i32
    %12 = arith.addi %7, %c128_i32_9 : i32
    %13 = arith.cmpi slt, %6, %12 : i32
    %c128_i32_10 = arith.constant 128 : i32
    %14 = arith.addi %6, %c128_i32_10 : i32
    %15 = arith.cmpi slt, %7, %14 : i32
    %16 = arith.andi %13, %15 : i1
    %c0_i32_11 = arith.constant 0 : i32
    %17 = arith.cmpi eq, %arg1, %c0_i32_11 : i32
    %true = arith.constant true
    %18 = arith.xori %17, %true : i1
    %true_12 = arith.constant true
    %19 = arith.xori %16, %true_12 : i1
    %20 = arith.andi %19, %18 : i1
    %21 = arith.extui %20 : i1 to i32
    %c0_i32_13 = arith.constant 0 : i32
    %22 = arith.cmpi ne, %21, %c0_i32_13 : i32
    scf.if %22 {
      %c0_17 = arith.constant 0 : index
      %c0_18 = arith.constant 0 : index
      %30 = vector.load %arg7[%c0_17, %c0_18] : memref<128x128xf32, #tpu.memory_space<vmem>>, vector<128x128xf32>
      %31 = arith.maximumf %30, %5 : vector<128x128xf32>
      %32 = arith.subf %30, %31 : vector<128x128xf32>
      %33 = math.exp %32 : vector<128x128xf32>
      %c0_19 = arith.constant 0 : index
      %c0_20 = arith.constant 0 : index
      %34 = vector.load %arg8[%c0_19, %c0_20] : memref<128x128xf32, #tpu.memory_space<vmem>>, vector<128x128xf32>
      %35 = arith.mulf %33, %34 : vector<128x128xf32>
      %c0_21 = arith.constant 0 : index
      %c0_22 = arith.constant 0 : index
      %36 = vector.load %arg9[%c0_21, %c0_22] : memref<128x128xf32, #tpu.memory_space<vmem>>, vector<128x128xf32>
      %c0_23 = arith.constant 0 : index
      %c0_24 = arith.constant 0 : index
      %37 = vector.load %arg10[%c0_23, %c0_24] : memref<128x128xf32, #tpu.memory_space<vmem>>, vector<128x128xf32>
      %38 = vector.broadcast %11 : vector<1x128xi32> to vector<128x128xi32>
      %39 = arith.cmpi eq, %10, %38 : vector<128x128xi32>
      %40 = arith.subf %5, %31 : vector<128x128xf32>
      %41 = math.exp %40 : vector<128x128xf32>
      %cst_25 = arith.constant 1.000000e+00 : f32
      %cst_26 = arith.constant 0.000000e+00 : f32
      %42 = vector.broadcast %cst_25 : f32 to vector<128x128xf32>
      %43 = vector.broadcast %cst_26 : f32 to vector<128x128xf32>
      %44 = arith.select %39, %42, %43 : vector<128x128xi1>, vector<128x128xf32>
      %45 = arith.addf %35, %41 : vector<128x128xf32>
      %46 = arith.mulf %44, %5 : vector<128x128xf32>
      %47 = arith.addf %36, %46 : vector<128x128xf32>
      %48 = arith.addf %37, %44 : vector<128x128xf32>
      %c0_27 = arith.constant 0 : index
      %c0_28 = arith.constant 0 : index
      %49 = vector.load %arg7[%c0_27, %c0_28] : memref<128x128xf32, #tpu.memory_space<vmem>>, vector<128x128xf32>
      tpu.vector_store %arg7[%c0_27, %c0_28], %31 {strides = array<i32>} : memref<128x128xf32, #tpu.memory_space<vmem>>, vector<128x128xf32>,
      %c0_29 = arith.constant 0 : index
      %c0_30 = arith.constant 0 : index
      %50 = vector.load %arg8[%c0_29, %c0_30] : memref<128x128xf32, #tpu.memory_space<vmem>>, vector<128x128xf32>
      tpu.vector_store %arg8[%c0_29, %c0_30], %45 {strides = array<i32>} : memref<128x128xf32, #tpu.memory_space<vmem>>, vector<128x128xf32>,
      %c0_31 = arith.constant 0 : index
      %c0_32 = arith.constant 0 : index
      %51 = vector.load %arg9[%c0_31, %c0_32] : memref<128x128xf32, #tpu.memory_space<vmem>>, vector<128x128xf32>
      tpu.vector_store %arg9[%c0_31, %c0_32], %47 {strides = array<i32>} : memref<128x128xf32, #tpu.memory_space<vmem>>, vector<128x128xf32>,
      %c0_33 = arith.constant 0 : index
      %c0_34 = arith.constant 0 : index
      %52 = vector.load %arg10[%c0_33, %c0_34] : memref<128x128xf32, #tpu.memory_space<vmem>>, vector<128x128xf32>
      tpu.vector_store %arg10[%c0_33, %c0_34], %48 {strides = array<i32>} : memref<128x128xf32, #tpu.memory_space<vmem>>, vector<128x128xf32>,
    } else {
    }
    %23 = arith.andi %16, %18 : i1
    %24 = arith.extui %23 : i1 to i32
    %c0_i32_14 = arith.constant 0 : i32
    %25 = arith.cmpi ne, %24, %c0_i32_14 : i32
    scf.if %25 {
      %30 = tpu.iota {dimensions = array<i32: 0>} : vector<128x128xi32>
      %31 = vector.broadcast %6 : i32 to vector<128x128xi32>
      %32 = arith.addi %31, %30 : vector<128x128xi32>
      %33 = tpu.iota {dimensions = array<i32: 1>} : vector<128x128xi32>
      %c0_17 = arith.constant 0 : index
      %c0_18 = arith.constant 0 : index
      %34 = vector.load %arg7[%c0_17, %c0_18] : memref<128x128xf32, #tpu.memory_space<vmem>>, vector<128x128xf32>
      %35 = arith.maximumf %34, %5 : vector<128x128xf32>
      %36 = arith.subf %34, %35 : vector<128x128xf32>
      %37 = math.exp %36 : vector<128x128xf32>
      %c0_19 = arith.constant 0 : index
      %c0_20 = arith.constant 0 : index
      %38 = vector.load %arg8[%c0_19, %c0_20] : memref<128x128xf32, #tpu.memory_space<vmem>>, vector<128x128xf32>
      %39 = arith.mulf %37, %38 : vector<128x128xf32>
      %c0_21 = arith.constant 0 : index
      %c0_22 = arith.constant 0 : index
      %40 = vector.load %arg9[%c0_21, %c0_22] : memref<128x128xf32, #tpu.memory_space<vmem>>, vector<128x128xf32>
      %c0_23 = arith.constant 0 : index
      %c0_24 = arith.constant 0 : index
      %41 = vector.load %arg10[%c0_23, %c0_24] : memref<128x128xf32, #tpu.memory_space<vmem>>, vector<128x128xf32>
      %42 = vector.broadcast %11 : vector<1x128xi32> to vector<128x128xi32>
      %43 = arith.cmpi eq, %10, %42 : vector<128x128xi32>
      %44 = arith.subf %5, %35 : vector<128x128xf32>
      %45 = math.exp %44 : vector<128x128xf32>
      %c0_i32_25 = arith.constant 0 : i32
      %46 = arith.addi %7, %c0_i32_25 : i32
      %47 = vector.broadcast %46 : i32 to vector<128x128xi32>
      %48 = arith.addi %47, %33 : vector<128x128xi32>
      %49 = arith.cmpi ne, %32, %48 : vector<128x128xi32>
      %cst_26 = arith.constant 0.000000e+00 : f32
      %50 = vector.broadcast %cst_26 : f32 to vector<128x128xf32>
      %51 = arith.select %49, %45, %50 : vector<128x128xi1>, vector<128x128xf32>
      %52 = arith.andi %43, %49 : vector<128x128xi1>
      %cst_27 = arith.constant 1.000000e+00 : f32
      %cst_28 = arith.constant 0.000000e+00 : f32
      %53 = vector.broadcast %cst_27 : f32 to vector<128x128xf32>
      %54 = vector.broadcast %cst_28 : f32 to vector<128x128xf32>
      %55 = arith.select %52, %53, %54 : vector<128x128xi1>, vector<128x128xf32>
      %56 = arith.addf %39, %51 : vector<128x128xf32>
      %57 = arith.mulf %55, %5 : vector<128x128xf32>
      %58 = arith.addf %40, %57 : vector<128x128xf32>
      %59 = arith.addf %41, %55 : vector<128x128xf32>
      %c0_29 = arith.constant 0 : index
      %c0_30 = arith.constant 0 : index
      %60 = vector.load %arg7[%c0_29, %c0_30] : memref<128x128xf32, #tpu.memory_space<vmem>>, vector<128x128xf32>
      tpu.vector_store %arg7[%c0_29, %c0_30], %35 {strides = array<i32>} : memref<128x128xf32, #tpu.memory_space<vmem>>, vector<128x128xf32>,
      %c0_31 = arith.constant 0 : index
      %c0_32 = arith.constant 0 : index
      %61 = vector.load %arg8[%c0_31, %c0_32] : memref<128x128xf32, #tpu.memory_space<vmem>>, vector<128x128xf32>
      tpu.vector_store %arg8[%c0_31, %c0_32], %56 {strides = array<i32>} : memref<128x128xf32, #tpu.memory_space<vmem>>, vector<128x128xf32>,
      %c0_33 = arith.constant 0 : index
      %c0_34 = arith.constant 0 : index
      %62 = vector.load %arg9[%c0_33, %c0_34] : memref<128x128xf32, #tpu.memory_space<vmem>>, vector<128x128xf32>
      tpu.vector_store %arg9[%c0_33, %c0_34], %58 {strides = array<i32>} : memref<128x128xf32, #tpu.memory_space<vmem>>, vector<128x128xf32>,
      %c0_35 = arith.constant 0 : index
      %c0_36 = arith.constant 0 : index
      %63 = vector.load %arg10[%c0_35, %c0_36] : memref<128x128xf32, #tpu.memory_space<vmem>>, vector<128x128xf32>
      tpu.vector_store %arg10[%c0_35, %c0_36], %59 {strides = array<i32>} : memref<128x128xf32, #tpu.memory_space<vmem>>, vector<128x128xf32>,
    } else {
    }
    %26 = arith.extui %17 : i1 to i32
    %c0_i32_15 = arith.constant 0 : i32
    %27 = arith.cmpi ne, %26, %c0_i32_15 : i32
    scf.if %27 {
      %30 = tpu.iota {dimensions = array<i32: 0>} : vector<128x128xi32>
      %31 = vector.broadcast %6 : i32 to vector<128x128xi32>
      %32 = arith.addi %31, %30 : vector<128x128xi32>
      %33 = tpu.iota {dimensions = array<i32: 1>} : vector<128x128xi32>
      %c0_17 = arith.constant 0 : index
      %c0_18 = arith.constant 0 : index
      %34 = vector.load %arg7[%c0_17, %c0_18] : memref<128x128xf32, #tpu.memory_space<vmem>>, vector<128x128xf32>
      %c0_i32_19 = arith.constant 0 : i32
      %35 = arith.addi %7, %c0_i32_19 : i32
      %36 = vector.broadcast %35 : i32 to vector<128x128xi32>
      %37 = arith.addi %36, %33 : vector<128x128xi32>
      %c8_i32 = arith.constant 8 : i32
      %38 = vector.broadcast %c8_i32 : i32 to vector<128x128xi32>
      %39 = arith.cmpi slt, %37, %38 : vector<128x128xi32>
      %cst_20 = arith.constant -1.000000e+30 : f32
      %40 = vector.broadcast %cst_20 : f32 to vector<128x128xf32>
      %41 = arith.select %39, %5, %40 : vector<128x128xi1>, vector<128x128xf32>
      %42 = arith.maximumf %34, %41 : vector<128x128xf32>
      %43 = arith.subf %34, %42 : vector<128x128xf32>
      %44 = math.exp %43 : vector<128x128xf32>
      %c0_21 = arith.constant 0 : index
      %c0_22 = arith.constant 0 : index
      %45 = vector.load %arg8[%c0_21, %c0_22] : memref<128x128xf32, #tpu.memory_space<vmem>>, vector<128x128xf32>
      %46 = arith.mulf %44, %45 : vector<128x128xf32>
      %c0_23 = arith.constant 0 : index
      %c0_24 = arith.constant 0 : index
      %47 = vector.load %arg9[%c0_23, %c0_24] : memref<128x128xf32, #tpu.memory_space<vmem>>, vector<128x128xf32>
      %c0_25 = arith.constant 0 : index
      %c0_26 = arith.constant 0 : index
      %48 = vector.load %arg10[%c0_25, %c0_26] : memref<128x128xf32, #tpu.memory_space<vmem>>, vector<128x128xf32>
      %49 = vector.broadcast %11 : vector<1x128xi32> to vector<128x128xi32>
      %50 = arith.cmpi eq, %10, %49 : vector<128x128xi32>
      %51 = arith.subf %5, %42 : vector<128x128xf32>
      %52 = math.exp %51 : vector<128x128xf32>
      %c0_i32_27 = arith.constant 0 : i32
      %53 = arith.addi %7, %c0_i32_27 : i32
      %54 = vector.broadcast %53 : i32 to vector<128x128xi32>
      %55 = arith.addi %54, %33 : vector<128x128xi32>
      %56 = arith.cmpi ne, %32, %55 : vector<128x128xi32>
      %c8_i32_28 = arith.constant 8 : i32
      %57 = vector.broadcast %c8_i32_28 : i32 to vector<128x128xi32>
      %58 = arith.cmpi slt, %55, %57 : vector<128x128xi32>
      %59 = arith.andi %56, %58 : vector<128x128xi1>
      %cst_29 = arith.constant 0.000000e+00 : f32
      %60 = vector.broadcast %cst_29 : f32 to vector<128x128xf32>
      %61 = arith.select %59, %52, %60 : vector<128x128xi1>, vector<128x128xf32>
      %62 = arith.andi %50, %59 : vector<128x128xi1>
      %cst_30 = arith.constant 1.000000e+00 : f32
      %cst_31 = arith.constant 0.000000e+00 : f32
      %63 = vector.broadcast %cst_30 : f32 to vector<128x128xf32>
      %64 = vector.broadcast %cst_31 : f32 to vector<128x128xf32>
      %65 = arith.select %62, %63, %64 : vector<128x128xi1>, vector<128x128xf32>
      %66 = arith.addf %46, %61 : vector<128x128xf32>
      %67 = arith.mulf %65, %5 : vector<128x128xf32>
      %68 = arith.addf %47, %67 : vector<128x128xf32>
      %69 = arith.addf %48, %65 : vector<128x128xf32>
      %c0_32 = arith.constant 0 : index
      %c0_33 = arith.constant 0 : index
      %70 = vector.load %arg7[%c0_32, %c0_33] : memref<128x128xf32, #tpu.memory_space<vmem>>, vector<128x128xf32>
      tpu.vector_store %arg7[%c0_32, %c0_33], %42 {strides = array<i32>} : memref<128x128xf32, #tpu.memory_space<vmem>>, vector<128x128xf32>,
      %c0_34 = arith.constant 0 : index
      %c0_35 = arith.constant 0 : index
      %71 = vector.load %arg8[%c0_34, %c0_35] : memref<128x128xf32, #tpu.memory_space<vmem>>, vector<128x128xf32>
      tpu.vector_store %arg8[%c0_34, %c0_35], %66 {strides = array<i32>} : memref<128x128xf32, #tpu.memory_space<vmem>>, vector<128x128xf32>,
      %c0_36 = arith.constant 0 : index
      %c0_37 = arith.constant 0 : index
      %72 = vector.load %arg9[%c0_36, %c0_37] : memref<128x128xf32, #tpu.memory_space<vmem>>, vector<128x128xf32>
      tpu.vector_store %arg9[%c0_36, %c0_37], %68 {strides = array<i32>} : memref<128x128xf32, #tpu.memory_space<vmem>>, vector<128x128xf32>,
      %c0_38 = arith.constant 0 : index
      %c0_39 = arith.constant 0 : index
      %73 = vector.load %arg10[%c0_38, %c0_39] : memref<128x128xf32, #tpu.memory_space<vmem>>, vector<128x128xf32>
      tpu.vector_store %arg10[%c0_38, %c0_39], %69 {strides = array<i32>} : memref<128x128xf32, #tpu.memory_space<vmem>>, vector<128x128xf32>,
    } else {
    }
    %28 = arith.extui %17 : i1 to i32
    %c0_i32_16 = arith.constant 0 : i32
    %29 = arith.cmpi ne, %28, %c0_i32_16 : i32
    scf.if %29 {
      %c0_17 = arith.constant 0 : index
      %c0_18 = arith.constant 0 : index
      %30 = vector.load %arg7[%c0_17, %c0_18] : memref<128x128xf32, #tpu.memory_space<vmem>>, vector<128x128xf32>
      %cst_19 = arith.constant dense<0xFF800000> : vector<128xf32>
      %31 = vector.multi_reduction <maximumf>, %30, %cst_19 [1] : vector<128x128xf32> to vector<128xf32>
      %32 = vector.shape_cast %31 : vector<128xf32> to vector<128x1xf32>
      %c0_20 = arith.constant 0 : index
      %c0_21 = arith.constant 0 : index
      %33 = vector.load %arg8[%c0_20, %c0_21] : memref<128x128xf32, #tpu.memory_space<vmem>>, vector<128x128xf32>
      %34 = vector.broadcast %32 : vector<128x1xf32> to vector<128x128xf32>
      %35 = arith.subf %30, %34 : vector<128x128xf32>
      %36 = math.exp %35 : vector<128x128xf32>
      %37 = arith.mulf %33, %36 : vector<128x128xf32>
      %cst_22 = arith.constant dense<0.000000e+00> : vector<128xf32>
      %38 = vector.multi_reduction <add>, %37, %cst_22 [1] : vector<128x128xf32> to vector<128xf32>
      %39 = vector.shape_cast %38 : vector<128xf32> to vector<128x1xf32>
      %c0_23 = arith.constant 0 : index
      %c0_24 = arith.constant 0 : index
      %40 = vector.load %arg9[%c0_23, %c0_24] : memref<128x128xf32, #tpu.memory_space<vmem>>, vector<128x128xf32>
      %cst_25 = arith.constant dense<0.000000e+00> : vector<128xf32>
      %41 = vector.multi_reduction <add>, %40, %cst_25 [1] : vector<128x128xf32> to vector<128xf32>
      %42 = vector.shape_cast %41 : vector<128xf32> to vector<128x1xf32>
      %c0_26 = arith.constant 0 : index
      %c0_27 = arith.constant 0 : index
      %43 = vector.load %arg10[%c0_26, %c0_27] : memref<128x128xf32, #tpu.memory_space<vmem>>, vector<128x128xf32>
      %cst_28 = arith.constant dense<0.000000e+00> : vector<128xf32>
      %44 = vector.multi_reduction <add>, %43, %cst_28 [1] : vector<128x128xf32> to vector<128xf32>
      %45 = vector.shape_cast %44 : vector<128xf32> to vector<128x1xf32>
      %cst_29 = arith.constant 9.99999997E-7 : f32
      %46 = vector.broadcast %cst_29 : f32 to vector<128x1xf32>
      %47 = arith.cmpf olt, %45, %46 : vector<128x1xf32>
      %cst_30 = arith.constant 1.000000e+00 : f32
      %48 = vector.broadcast %cst_30 : f32 to vector<128x1xf32>
      %49 = arith.select %47, %48, %45 : vector<128x1xi1>, vector<128x1xf32>
      %50 = arith.mulf %45, %32 : vector<128x1xf32>
      %51 = arith.subf %42, %50 : vector<128x1xf32>
      %cst_31 = arith.constant 9.99999997E-7 : f32
      %52 = vector.broadcast %cst_31 : f32 to vector<128x1xf32>
      %53 = arith.addf %39, %52 : vector<128x1xf32>
      %54 = math.log %53 : vector<128x1xf32>
      %55 = arith.mulf %45, %54 : vector<128x1xf32>
      %56 = arith.subf %51, %55 : vector<128x1xf32>
      %57 = arith.divf %56, %49 : vector<128x1xf32>
      %cst_32 = arith.constant -1.000000e+00 : f32
      %58 = vector.broadcast %cst_32 : f32 to vector<128x1xf32>
      %59 = arith.mulf %58, %57 : vector<128x1xf32>
      %60 = vector.shape_cast %59 : vector<128x1xf32> to vector<128x1xf32>
      %61 = vector.broadcast %60 : vector<128x1xf32> to vector<128x128xf32>
      %c0_33 = arith.constant 0 : index
      %c0_34 = arith.constant 0 : index
      %62 = vector.load %arg6[%c0_33, %c0_34] : memref<128x128xf32, #tpu.memory_space<vmem>>, vector<128x128xf32>
      tpu.vector_store %arg6[%c0_33, %c0_34], %61 {strides = array<i32>} : memref<128x128xf32, #tpu.memory_space<vmem>>, vector<128x128xf32>,
    } else {
    }
    return
  }
  func.func @transform_0(%arg0: i32, %arg1: i32) -> (i32, i32) {
    %c0_i32 = arith.constant 0 : i32
    %c0_i32_0 = arith.constant 0 : i32
    return %arg0, %c0_i32 : i32, i32
  }
  func.func @transform_1(%arg0: i32, %arg1: i32) -> (i32, i32) {
    %c0_i32 = arith.constant 0 : i32
    %c0_i32_0 = arith.constant 0 : i32
    return %c0_i32, %arg1 : i32, i32
  }
  func.func @transform_2(%arg0: i32, %arg1: i32) -> (i32, i32) {
    %c0_i32 = arith.constant 0 : i32
    %c0_i32_0 = arith.constant 0 : i32
    return %arg0, %c0_i32 : i32, i32
  }
  func.func @transform_3(%arg0: i32, %arg1: i32) -> (i32, i32) {
    %c0_i32 = arith.constant 0 : i32
    %c0_i32_0 = arith.constant 0 : i32
    return %c0_i32, %arg1 : i32, i32
  }
  func.func @transform_4(%arg0: i32, %arg1: i32) -> (i32, i32) {
    %c0_i32 = arith.constant 0 : i32
    %c0_i32_0 = arith.constant 0 : i32
    return %arg0, %c0_i32 : i32, i32
  }
}

</mosaic_0001>

<llo_original>
// kernel: tpu_custom_call.1
$region0: #{tpu_custom_call.1}
  #allocation0 [shape = 'u32[]', space=smem, size = 0x4, offset = 0x4, fixed_abs, tag = 'smem constant byte address 0x4 - core index']
  #allocation1 [shape = 'u32[72,128]{1,0:T(1,128)}', space=vmem, size = 0x9000, scoped, tag = 'internal scratch']
  #allocation2 [shape = 'f32[128,128]{1,0:T(8,128)}', space=vmem, size = 0x10000, scoped, tag = 'scratch operand']
  #allocation3 [shape = 'f32[128,128]{1,0:T(8,128)}', space=vmem, size = 0x10000, scoped, tag = 'scratch operand']
  #allocation4 [shape = 'f32[128,128]{1,0:T(8,128)}', space=vmem, size = 0x10000, scoped, tag = 'scratch operand']
  #allocation5 [shape = 'f32[128,128]{1,0:T(8,128)}', space=vmem, size = 0x10000, scoped, tag = 'scratch operand']
  %s0 = inlined_call_operand.vmem [shape: f32[128,128], index: 0, kind: input, shape index: {}]
  %s1 = inlined_call_operand.hbm [shape: f32[128,128], index: 1, kind: input, shape index: {}]
  %s2 = inlined_call_operand.vmem [shape: s32[128,1], index: 2, kind: input, shape index: {}]
  %s3 = inlined_call_operand.vmem [shape: s32[1,128], index: 3, kind: input, shape index: {}]
  %s4 = inlined_call_operand.hbm [shape: f32[128,128], index: 4, kind: output, shape index: {}]
  %s5 = sld [smem:[#allocation0]]
  $region46: #{tpu_custom_call.1} parent=0
    _
  %s7 = ssub.s32 1, %s5
  %s8 = scalar_select 0, %s7, %s5
  $region1: #{tpu_custom_call.1} parent=0
    #allocation6 [shape = 'u8[65536]{0}', space=vmem, size = 0x10000, scoped, tag = 'input window, operand 1, single buffered']
    #allocation7 [shape = 's32[1]{0}', space=sflag, size = 0x4, scoped, tag = 'scoped memory for tpu_custom_call.1']
    #allocation8 [shape = 's32[1]{0}', space=sflag, size = 0x4, scoped, tag = 'scoped memory for tpu_custom_call.1']
    #allocation9 [shape = 'u8[65536]{0}', space=vmem, size = 0x10000, scoped, tag = 'output window, operand 0, single buffered']
    %9 = vsyncpa [#allocation7], 0
    %10 = vsyncpa [#allocation8], 0
    // Predicated region
    $region2: #{tpu_custom_call.1} parent=1 // pred_check
      _
    $region3: #{tpu_custom_call.1} parent=1 // pred_check_branch
      %12 = sbr.rel (0) target = $region5
    $region4: #{tpu_custom_call.1} parent=1 // pred_region
      _
    $region5: #{tpu_custom_call.1} parent=1 // pred_fallthru
      _
    // Predicated region
    $region6: #{tpu_custom_call.1} parent=1 // pred_check
      _
    $region7: #{tpu_custom_call.1} parent=1 // pred_check_branch
      %14 = sbr.rel (0) target = $region9
    $region8: #{tpu_custom_call.1} parent=1 // pred_region
      %16 = vsyncadd [#allocation7], 0
      %s17 = sshll.u32 %s1, 4
      %s18 = int_to_ptr.hbm [resolvable:$true] %s17
      %s19 = sshll.u32 [#allocation6], 4
      %s20 = int_to_ptr.vmem [resolvable:$true] %s19
      %25 = dma.hbm_to_vmem [thread:$0]  %s18, 2048, %s20, [#allocation7], 128, 128, 8
    $region9: #{tpu_custom_call.1} parent=1 // pred_fallthru
      _
    // Predicated region
    $region10: #{tpu_custom_call.1} parent=1 // pred_check
      _
    $region11: #{tpu_custom_call.1} parent=1 // pred_check_branch
      %27 = sbr.rel (0) target = $region13
    $region12: #{tpu_custom_call.1} parent=1 // pred_region
      _
    $region13: #{tpu_custom_call.1} parent=1 // pred_fallthru
      _
    // Predicated region
    $region14: #{tpu_custom_call.1} parent=1 // pred_check
      _
    $region15: #{tpu_custom_call.1} parent=1 // pred_check_branch
      %29 = sbr.rel (0) target = $region17
    $region16: #{tpu_custom_call.1} parent=1 // pred_region
      _
    $region17: #{tpu_custom_call.1} parent=1 // pred_fallthru
      _
    // Predicated region
    $region18: #{tpu_custom_call.1} parent=1 // pred_check
      _
    $region19: #{tpu_custom_call.1} parent=1 // pred_check_branch
      %31 = sbr.rel (0) target = $region21
    $region20: #{tpu_custom_call.1} parent=1 // pred_region
      %33 = dma.done [#allocation7], 2048
    $region21: #{tpu_custom_call.1} parent=1 // pred_fallthru
      _
    %p34 = scmp.eq.s32.totalorder 0, 0
    // Predicated region
    $region22: #{tpu_custom_call.1} parent=1 // pred_check
      %p35 = pneg %p34
    $region23: #{tpu_custom_call.1} parent=1 // pred_check_branch
      %37 = sbr.rel (%p35) target = $region25
    $region24: #{tpu_custom_call.1} parent=1 // pred_region
      %38 = vst [vmem:[#allocation2] sm:$0xff] -1e+30
      %39 = vst [vmem:[#allocation2 + $0x8] sm:$0xff] -1e+30
      %40 = vst [vmem:[#allocation2 + $0x10] sm:$0xff] -1e+30
      %41 = vst [vmem:[#allocation2 + $0x18] sm:$0xff] -1e+30
      %42 = vst [vmem:[#allocation2 + $0x20] sm:$0xff] -1e+30
      %43 = vst [vmem:[#allocation2 + $0x28] sm:$0xff] -1e+30
      %44 = vst [vmem:[#allocation2 + $0x30] sm:$0xff] -1e+30
      %45 = vst [vmem:[#allocation2 + $0x38] sm:$0xff] -1e+30
      %46 = vst [vmem:[#allocation2 + $0x40] sm:$0xff] -1e+30
      %47 = vst [vmem:[#allocation2 + $0x48] sm:$0xff] -1e+30
      %48 = vst [vmem:[#allocation2 + $0x50] sm:$0xff] -1e+30
      %49 = vst [vmem:[#allocation2 + $0x58] sm:$0xff] -1e+30
      %50 = vst [vmem:[#allocation2 + $0x60] sm:$0xff] -1e+30
      %51 = vst [vmem:[#allocation2 + $0x68] sm:$0xff] -1e+30
      %52 = vst [vmem:[#allocation2 + $0x70] sm:$0xff] -1e+30
      %53 = vst [vmem:[#allocation2 + $0x78] sm:$0xff] -1e+30
      %54 = vst [vmem:[#allocation3] sm:$0xff] 0.0
      %55 = vst [vmem:[#allocation3 + $0x8] sm:$0xff] 0.0
      %56 = vst [vmem:[#allocation3 + $0x10] sm:$0xff] 0.0
      %57 = vst [vmem:[#allocation3 + $0x18] sm:$0xff] 0.0
      %58 = vst [vmem:[#allocation3 + $0x20] sm:$0xff] 0.0
      %59 = vst [vmem:[#allocation3 + $0x28] sm:$0xff] 0.0
      %60 = vst [vmem:[#allocation3 + $0x30] sm:$0xff] 0.0
      %61 = vst [vmem:[#allocation3 + $0x38] sm:$0xff] 0.0
      %62 = vst [vmem:[#allocation3 + $0x40] sm:$0xff] 0.0
      %63 = vst [vmem:[#allocation3 + $0x48] sm:$0xff] 0.0
      %64 = vst [vmem:[#allocation3 + $0x50] sm:$0xff] 0.0
      %65 = vst [vmem:[#allocation3 + $0x58] sm:$0xff] 0.0
      %66 = vst [vmem:[#allocation3 + $0x60] sm:$0xff] 0.0
      %67 = vst [vmem:[#allocation3 + $0x68] sm:$0xff] 0.0
      %68 = vst [vmem:[#allocation3 + $0x70] sm:$0xff] 0.0
      %69 = vst [vmem:[#allocation3 + $0x78] sm:$0xff] 0.0
      %70 = vst [vmem:[#allocation4] sm:$0xff] 0.0
      %71 = vst [vmem:[#allocation4 + $0x8] sm:$0xff] 0.0
      %72 = vst [vmem:[#allocation4 + $0x10] sm:$0xff] 0.0
      %73 = vst [vmem:[#allocation4 + $0x18] sm:$0xff] 0.0
      %74 = vst [vmem:[#allocation4 + $0x20] sm:$0xff] 0.0
      %75 = vst [vmem:[#allocation4 + $0x28] sm:$0xff] 0.0
      %76 = vst [vmem:[#allocation4 + $0x30] sm:$0xff] 0.0
      %77 = vst [vmem:[#allocation4 + $0x38] sm:$0xff] 0.0
      %78 = vst [vmem:[#allocation4 + $0x40] sm:$0xff] 0.0
      %79 = vst [vmem:[#allocation4 + $0x48] sm:$0xff] 0.0
      %80 = vst [vmem:[#allocation4 + $0x50] sm:$0xff] 0.0
      %81 = vst [vmem:[#allocation4 + $0x58] sm:$0xff] 0.0
      %82 = vst [vmem:[#allocation4 + $0x60] sm:$0xff] 0.0
      %83 = vst [vmem:[#allocation4 + $0x68] sm:$0xff] 0.0
      %84 = vst [vmem:[#allocation4 + $0x70] sm:$0xff] 0.0
      %85 = vst [vmem:[#allocation4 + $0x78] sm:$0xff] 0.0
      %86 = vst [vmem:[#allocation5] sm:$0xff] 0.0
      %87 = vst [vmem:[#allocation5 + $0x8] sm:$0xff] 0.0
      %88 = vst [vmem:[#allocation5 + $0x10] sm:$0xff] 0.0
      %89 = vst [vmem:[#allocation5 + $0x18] sm:$0xff] 0.0
      %90 = vst [vmem:[#allocation5 + $0x20] sm:$0xff] 0.0
      %91 = vst [vmem:[#allocation5 + $0x28] sm:$0xff] 0.0
      %92 = vst [vmem:[#allocation5 + $0x30] sm:$0xff] 0.0
      %93 = vst [vmem:[#allocation5 + $0x38] sm:$0xff] 0.0
      %94 = vst [vmem:[#allocation5 + $0x40] sm:$0xff] 0.0
      %95 = vst [vmem:[#allocation5 + $0x48] sm:$0xff] 0.0
      %96 = vst [vmem:[#allocation5 + $0x50] sm:$0xff] 0.0
      %97 = vst [vmem:[#allocation5 + $0x58] sm:$0xff] 0.0
      %98 = vst [vmem:[#allocation5 + $0x60] sm:$0xff] 0.0
      %99 = vst [vmem:[#allocation5 + $0x68] sm:$0xff] 0.0
      %100 = vst [vmem:[#allocation5 + $0x70] sm:$0xff] 0.0
      %101 = vst [vmem:[#allocation5 + $0x78] sm:$0xff] 0.0
    $region25: #{tpu_custom_call.1} parent=1 // pred_fallthru
      _
    %v102 = vld [vmem:[%s0] sm:$0xff]
    %v103 = vld [vmem:[%s0 + $0x8] sm:$0xff]
    %v104 = vld [vmem:[%s0 + $0x10] sm:$0xff]
    %v105 = vld [vmem:[%s0 + $0x18] sm:$0xff]
    %v106 = vld [vmem:[%s0 + $0x20] sm:$0xff]
    %v107 = vld [vmem:[%s0 + $0x28] sm:$0xff]
    %v108 = vld [vmem:[%s0 + $0x30] sm:$0xff]
    %v109 = vld [vmem:[%s0 + $0x38] sm:$0xff]
    %v110 = vld [vmem:[%s0 + $0x40] sm:$0xff]
    %v111 = vld [vmem:[%s0 + $0x48] sm:$0xff]
    %v112 = vld [vmem:[%s0 + $0x50] sm:$0xff]
    %v113 = vld [vmem:[%s0 + $0x58] sm:$0xff]
    %v114 = vld [vmem:[%s0 + $0x60] sm:$0xff]
    %v115 = vld [vmem:[%s0 + $0x68] sm:$0xff]
    %v116 = vld [vmem:[%s0 + $0x70] sm:$0xff]
    %v117 = vld [vmem:[%s0 + $0x78] sm:$0xff]
    %v118 = vld [vmem:[#allocation6] sm:$0xff]
    %v119 = vld [vmem:[#allocation6 + $0x8] sm:$0xff]
    %v120 = vld [vmem:[#allocation6 + $0x10] sm:$0xff]
    %v121 = vld [vmem:[#allocation6 + $0x18] sm:$0xff]
    %v122 = vld [vmem:[#allocation6 + $0x20] sm:$0xff]
    %v123 = vld [vmem:[#allocation6 + $0x28] sm:$0xff]
    %v124 = vld [vmem:[#allocation6 + $0x30] sm:$0xff]
    %v125 = vld [vmem:[#allocation6 + $0x38] sm:$0xff]
    %v126 = vld [vmem:[#allocation6 + $0x40] sm:$0xff]
    %v127 = vld [vmem:[#allocation6 + $0x48] sm:$0xff]
    %v128 = vld [vmem:[#allocation6 + $0x50] sm:$0xff]
    %v129 = vld [vmem:[#allocation6 + $0x58] sm:$0xff]
    %v130 = vld [vmem:[#allocation6 + $0x60] sm:$0xff]
    %v131 = vld [vmem:[#allocation6 + $0x68] sm:$0xff]
    %v132 = vld [vmem:[#allocation6 + $0x70] sm:$0xff]
    %v133 = vld [vmem:[#allocation6 + $0x78] sm:$0xff]
    %134 = vmatpush.msra.mxu0 %v133
    %135 = vmatpush.msra.mxu0 %v132
    %136 = vmatpush.msra.mxu0 %v131
    %137 = vmatpush.msra.mxu0 %v130
    %138 = vmatpush.msra.mxu0 %v129
    %139 = vmatpush.msra.mxu0 %v128
    %140 = vmatpush.msra.mxu0 %v127
    %141 = vmatpush.msra.mxu0 %v126
    %142 = vmatpush.msra.mxu0 %v125
    %143 = vmatpush.msra.mxu0 %v124
    %144 = vmatpush.msra.mxu0 %v123
    %145 = vmatpush.msra.mxu0 %v122
    %146 = vmatpush.msra.mxu0 %v121
    %147 = vmatpush.msra.mxu0 %v120
    %148 = vmatpush.msra.mxu0 %v119
    %149 = vmatpush.msra.mxu0 %v118
    %150 = vmatmul.f32.gmra.mxu0 %v102
    %v151 = vpop.f32.mrf.mxu0
    %v152 = vadd.f32 0.0, %v151
    %153 = vmatmul.f32.gmra.mxu0 %v103
    %v154 = vpop.f32.mrf.mxu0
    %v155 = vadd.f32 0.0, %v154
    %156 = vmatmul.f32.gmra.mxu0 %v104
    %v157 = vpop.f32.mrf.mxu0
    %v158 = vadd.f32 0.0, %v157
    %159 = vmatmul.f32.gmra.mxu0 %v105
    %v160 = vpop.f32.mrf.mxu0
    %v161 = vadd.f32 0.0, %v160
    %162 = vmatmul.f32.gmra.mxu0 %v106
    %v163 = vpop.f32.mrf.mxu0
    %v164 = vadd.f32 0.0, %v163
    %165 = vmatmul.f32.gmra.mxu0 %v107
    %v166 = vpop.f32.mrf.mxu0
    %v167 = vadd.f32 0.0, %v166
    %168 = vmatmul.f32.gmra.mxu0 %v108
    %v169 = vpop.f32.mrf.mxu0
    %v170 = vadd.f32 0.0, %v169
    %171 = vmatmul.f32.gmra.mxu0 %v109
    %v172 = vpop.f32.mrf.mxu0
    %v173 = vadd.f32 0.0, %v172
    %174 = vmatmul.f32.gmra.mxu0 %v110
    %v175 = vpop.f32.mrf.mxu0
    %v176 = vadd.f32 0.0, %v175
    %177 = vmatmul.f32.gmra.mxu0 %v111
    %v178 = vpop.f32.mrf.mxu0
    %v179 = vadd.f32 0.0, %v178
    %180 = vmatmul.f32.gmra.mxu0 %v112
    %v181 = vpop.f32.mrf.mxu0
    %v182 = vadd.f32 0.0, %v181
    %183 = vmatmul.f32.gmra.mxu0 %v113
    %v184 = vpop.f32.mrf.mxu0
    %v185 = vadd.f32 0.0, %v184
    %186 = vmatmul.f32.gmra.mxu0 %v114
    %v187 = vpop.f32.mrf.mxu0
    %v188 = vadd.f32 0.0, %v187
    %189 = vmatmul.f32.gmra.mxu0 %v115
    %v190 = vpop.f32.mrf.mxu0
    %v191 = vadd.f32 0.0, %v190
    %192 = vmatmul.f32.gmra.mxu0 %v116
    %v193 = vpop.f32.mrf.mxu0
    %v194 = vadd.f32 0.0, %v193
    %195 = vmatmul.f32.gmra.mxu0 %v117
    %v196 = vpop.f32.mrf.mxu0
    %v197 = vadd.f32 0.0, %v196
    %198 = vdwg.mxu0
    %s199 = smul.u32 0, 128
    %s200 = smul.u32 0, 128
    %v201 = vld [vmem:[%s2] sm:$0xff]
    %v202 = vld [vmem:[%s2 + $0x8] sm:$0xff]
    %v203 = vld [vmem:[%s2 + $0x10] sm:$0xff]
    %v204 = vld [vmem:[%s2 + $0x18] sm:$0xff]
    %v205 = vld [vmem:[%s2 + $0x20] sm:$0xff]
    %v206 = vld [vmem:[%s2 + $0x28] sm:$0xff]
    %v207 = vld [vmem:[%s2 + $0x30] sm:$0xff]
    %v208 = vld [vmem:[%s2 + $0x38] sm:$0xff]
    %v209 = vld [vmem:[%s2 + $0x40] sm:$0xff]
    %v210 = vld [vmem:[%s2 + $0x48] sm:$0xff]
    %v211 = vld [vmem:[%s2 + $0x50] sm:$0xff]
    %v212 = vld [vmem:[%s2 + $0x58] sm:$0xff]
    %v213 = vld [vmem:[%s2 + $0x60] sm:$0xff]
    %v214 = vld [vmem:[%s2 + $0x68] sm:$0xff]
    %v215 = vld [vmem:[%s2 + $0x70] sm:$0xff]
    %v216 = vld [vmem:[%s2 + $0x78] sm:$0xff]
    %217 = vset.pattern.permute.xlu0 0
    %218 = vperm.xlu0 %217, %v201
    %v219 = vpop.permute.xlu0 %218
    %220 = vset.pattern.permute.xlu0 0
    %221 = vperm.xlu0 %220, %v202
    %v222 = vpop.permute.xlu0 %221
    %223 = vset.pattern.permute.xlu0 0
    %224 = vperm.xlu0 %223, %v203
    %v225 = vpop.permute.xlu0 %224
    %226 = vset.pattern.permute.xlu0 0
    %227 = vperm.xlu0 %226, %v204
    %v228 = vpop.permute.xlu0 %227
    %229 = vset.pattern.permute.xlu0 0
    %230 = vperm.xlu0 %229, %v205
    %v231 = vpop.permute.xlu0 %230
    %232 = vset.pattern.permute.xlu0 0
    %233 = vperm.xlu0 %232, %v206
    %v234 = vpop.permute.xlu0 %233
    %235 = vset.pattern.permute.xlu0 0
    %236 = vperm.xlu0 %235, %v207
    %v237 = vpop.permute.xlu0 %236
    %238 = vset.pattern.permute.xlu0 0
    %239 = vperm.xlu0 %238, %v208
    %v240 = vpop.permute.xlu0 %239
    %241 = vset.pattern.permute.xlu0 0
    %242 = vperm.xlu0 %241, %v209
    %v243 = vpop.permute.xlu0 %242
    %244 = vset.pattern.permute.xlu0 0
    %245 = vperm.xlu0 %244, %v210
    %v246 = vpop.permute.xlu0 %245
    %247 = vset.pattern.permute.xlu0 0
    %248 = vperm.xlu0 %247, %v211
    %v249 = vpop.permute.xlu0 %248
    %250 = vset.pattern.permute.xlu0 0
    %251 = vperm.xlu0 %250, %v212
    %v252 = vpop.permute.xlu0 %251
    %253 = vset.pattern.permute.xlu0 0
    %254 = vperm.xlu0 %253, %v213
    %v255 = vpop.permute.xlu0 %254
    %256 = vset.pattern.permute.xlu0 0
    %257 = vperm.xlu0 %256, %v214
    %v258 = vpop.permute.xlu0 %257
    %259 = vset.pattern.permute.xlu0 0
    %260 = vperm.xlu0 %259, %v215
    %v261 = vpop.permute.xlu0 %260
    %262 = vset.pattern.permute.xlu0 0
    %263 = vperm.xlu0 %262, %v216
    %v264 = vpop.permute.xlu0 %263
    %v265 = vld [vmem:[%s3] sm:$0x1]
    %s266 = sadd.s32 %s200, 128
    %p267 = scmp.lt.s32.totalorder %s199, %s266
    %s268 = sadd.s32 %s199, 128
    %p269 = scmp.lt.s32.totalorder %s200, %s268
    %p270 = pnand %p267, %p269
    %p271 = pneg %p270
    %p272 = scmp.ne.s32.totalorder 0, 0
    %p273 = pneg %p271
    %p274 = pnand %p273, %p272
    %p275 = pneg %p274
    // Predicated region
    $region26: #{tpu_custom_call.1} parent=1 // pred_check
      _
    $region27: #{tpu_custom_call.1} parent=1 // pred_check_branch
      %277 = sbr.rel (%p274) target = $region29
    $region28: #{tpu_custom_call.1} parent=1 // pred_region
      %v278 = vld [vmem:[#allocation2] sm:$0xff]
      %v279 = vld [vmem:[#allocation2 + $0x8] sm:$0xff]
      %v280 = vld [vmem:[#allocation2 + $0x10] sm:$0xff]
      %v281 = vld [vmem:[#allocation2 + $0x18] sm:$0xff]
      %v282 = vld [vmem:[#allocation2 + $0x20] sm:$0xff]
      %v283 = vld [vmem:[#allocation2 + $0x28] sm:$0xff]
      %v284 = vld [vmem:[#allocation2 + $0x30] sm:$0xff]
      %v285 = vld [vmem:[#allocation2 + $0x38] sm:$0xff]
      %v286 = vld [vmem:[#allocation2 + $0x40] sm:$0xff]
      %v287 = vld [vmem:[#allocation2 + $0x48] sm:$0xff]
      %v288 = vld [vmem:[#allocation2 + $0x50] sm:$0xff]
      %v289 = vld [vmem:[#allocation2 + $0x58] sm:$0xff]
      %v290 = vld [vmem:[#allocation2 + $0x60] sm:$0xff]
      %v291 = vld [vmem:[#allocation2 + $0x68] sm:$0xff]
      %v292 = vld [vmem:[#allocation2 + $0x70] sm:$0xff]
      %v293 = vld [vmem:[#allocation2 + $0x78] sm:$0xff]
      %v294 = vmax.f32 %v278, %v152
      %v295 = vmax.f32 %v279, %v155
      %v296 = vmax.f32 %v280, %v158
      %v297 = vmax.f32 %v281, %v161
      %v298 = vmax.f32 %v282, %v164
      %v299 = vmax.f32 %v283, %v167
      %v300 = vmax.f32 %v284, %v170
      %v301 = vmax.f32 %v285, %v173
      %v302 = vmax.f32 %v286, %v176
      %v303 = vmax.f32 %v287, %v179
      %v304 = vmax.f32 %v288, %v182
      %v305 = vmax.f32 %v289, %v185
      %v306 = vmax.f32 %v290, %v188
      %v307 = vmax.f32 %v291, %v191
      %v308 = vmax.f32 %v292, %v194
      %v309 = vmax.f32 %v293, %v197
      %v310 = vsub.f32 %v278, %v294
      %v311 = vsub.f32 %v279, %v295
      %v312 = vsub.f32 %v280, %v296
      %v313 = vsub.f32 %v281, %v297
      %v314 = vsub.f32 %v282, %v298
      %v315 = vsub.f32 %v283, %v299
      %v316 = vsub.f32 %v284, %v300
      %v317 = vsub.f32 %v285, %v301
      %v318 = vsub.f32 %v286, %v302
      %v319 = vsub.f32 %v287, %v303
      %v320 = vsub.f32 %v288, %v304
      %v321 = vsub.f32 %v289, %v305
      %v322 = vsub.f32 %v290, %v306
      %v323 = vsub.f32 %v291, %v307
      %v324 = vsub.f32 %v292, %v308
      %v325 = vsub.f32 %v293, %v309
      %v326 = vmul.f32 %v310, 1.442695
      %v327 = vpow.pop %v326
      %v328 = vmul.f32 %v311, 1.442695
      %v329 = vpow.pop %v328
      %v330 = vmul.f32 %v312, 1.442695
      %v331 = vpow.pop %v330
      %v332 = vmul.f32 %v313, 1.442695
      %v333 = vpow.pop %v332
      %v334 = vmul.f32 %v314, 1.442695
      %v335 = vpow.pop %v334
      %v336 = vmul.f32 %v315, 1.442695
      %v337 = vpow.pop %v336
      %v338 = vmul.f32 %v316, 1.442695
      %v339 = vpow.pop %v338
      %v340 = vmul.f32 %v317, 1.442695
      %v341 = vpow.pop %v340
      %v342 = vmul.f32 %v318, 1.442695
      %v343 = vpow.pop %v342
      %v344 = vmul.f32 %v319, 1.442695
      %v345 = vpow.pop %v344
      %v346 = vmul.f32 %v320, 1.442695
      %v347 = vpow.pop %v346
      %v348 = vmul.f32 %v321, 1.442695
      %v349 = vpow.pop %v348
      %v350 = vmul.f32 %v322, 1.442695
      %v351 = vpow.pop %v350
      %v352 = vmul.f32 %v323, 1.442695
      %v353 = vpow.pop %v352
      %v354 = vmul.f32 %v324, 1.442695
      %v355 = vpow.pop %v354
      %v356 = vmul.f32 %v325, 1.442695
      %v357 = vpow.pop %v356
      %v358 = vld [vmem:[#allocation3] sm:$0xff]
      %v359 = vld [vmem:[#allocation3 + $0x8] sm:$0xff]
      %v360 = vld [vmem:[#allocation3 + $0x10] sm:$0xff]
      %v361 = vld [vmem:[#allocation3 + $0x18] sm:$0xff]
      %v362 = vld [vmem:[#allocation3 + $0x20] sm:$0xff]
      %v363 = vld [vmem:[#allocation3 + $0x28] sm:$0xff]
      %v364 = vld [vmem:[#allocation3 + $0x30] sm:$0xff]
      %v365 = vld [vmem:[#allocation3 + $0x38] sm:$0xff]
      %v366 = vld [vmem:[#allocation3 + $0x40] sm:$0xff]
      %v367 = vld [vmem:[#allocation3 + $0x48] sm:$0xff]
      %v368 = vld [vmem:[#allocation3 + $0x50] sm:$0xff]
      %v369 = vld [vmem:[#allocation3 + $0x58] sm:$0xff]
      %v370 = vld [vmem:[#allocation3 + $0x60] sm:$0xff]
      %v371 = vld [vmem:[#allocation3 + $0x68] sm:$0xff]
      %v372 = vld [vmem:[#allocation3 + $0x70] sm:$0xff]
      %v373 = vld [vmem:[#allocation3 + $0x78] sm:$0xff]
      %v374 = vmul.f32 %v327, %v358
      %v375 = vmul.f32 %v329, %v359
      %v376 = vmul.f32 %v331, %v360
      %v377 = vmul.f32 %v333, %v361
      %v378 = vmul.f32 %v335, %v362
      %v379 = vmul.f32 %v337, %v363
      %v380 = vmul.f32 %v339, %v364
      %v381 = vmul.f32 %v341, %v365
      %v382 = vmul.f32 %v343, %v366
      %v383 = vmul.f32 %v345, %v367
      %v384 = vmul.f32 %v347, %v368
      %v385 = vmul.f32 %v349, %v369
      %v386 = vmul.f32 %v351, %v370
      %v387 = vmul.f32 %v353, %v371
      %v388 = vmul.f32 %v355, %v372
      %v389 = vmul.f32 %v357, %v373
      %v390 = vld [vmem:[#allocation4] sm:$0xff]
      %v391 = vld [vmem:[#allocation4 + $0x8] sm:$0xff]
      %v392 = vld [vmem:[#allocation4 + $0x10] sm:$0xff]
      %v393 = vld [vmem:[#allocation4 + $0x18] sm:$0xff]
      %v394 = vld [vmem:[#allocation4 + $0x20] sm:$0xff]
      %v395 = vld [vmem:[#allocation4 + $0x28] sm:$0xff]
      %v396 = vld [vmem:[#allocation4 + $0x30] sm:$0xff]
      %v397 = vld [vmem:[#allocation4 + $0x38] sm:$0xff]
      %v398 = vld [vmem:[#allocation4 + $0x40] sm:$0xff]
      %v399 = vld [vmem:[#allocation4 + $0x48] sm:$0xff]
      %v400 = vld [vmem:[#allocation4 + $0x50] sm:$0xff]
      %v401 = vld [vmem:[#allocation4 + $0x58] sm:$0xff]
      %v402 = vld [vmem:[#allocation4 + $0x60] sm:$0xff]
      %v403 = vld [vmem:[#allocation4 + $0x68] sm:$0xff]
      %v404 = vld [vmem:[#allocation4 + $0x70] sm:$0xff]
      %v405 = vld [vmem:[#allocation4 + $0x78] sm:$0xff]
      %v406 = vld [vmem:[#allocation5] sm:$0xff]
      %v407 = vld [vmem:[#allocation5 + $0x8] sm:$0xff]
      %v408 = vld [vmem:[#allocation5 + $0x10] sm:$0xff]
      %v409 = vld [vmem:[#allocation5 + $0x18] sm:$0xff]
      %v410 = vld [vmem:[#allocation5 + $0x20] sm:$0xff]
      %v411 = vld [vmem:[#allocation5 + $0x28] sm:$0xff]
      %v412 = vld [vmem:[#allocation5 + $0x30] sm:$0xff]
      %v413 = vld [vmem:[#allocation5 + $0x38] sm:$0xff]
      %v414 = vld [vmem:[#allocation5 + $0x40] sm:$0xff]
      %v415 = vld [vmem:[#allocation5 + $0x48] sm:$0xff]
      %v416 = vld [vmem:[#allocation5 + $0x50] sm:$0xff]
      %v417 = vld [vmem:[#allocation5 + $0x58] sm:$0xff]
      %v418 = vld [vmem:[#allocation5 + $0x60] sm:$0xff]
      %v419 = vld [vmem:[#allocation5 + $0x68] sm:$0xff]
      %v420 = vld [vmem:[#allocation5 + $0x70] sm:$0xff]
      %v421 = vld [vmem:[#allocation5 + $0x78] sm:$0xff]
      %v422 = vperm.slane %v265, 0
      %vm423 = vcmp.eq.s32.totalorder %v219, %v422
      %vm424 = vcmp.eq.s32.totalorder %v222, %v422
      %vm425 = vcmp.eq.s32.totalorder %v225, %v422
      %vm426 = vcmp.eq.s32.totalorder %v228, %v422
      %vm427 = vcmp.eq.s32.totalorder %v231, %v422
      %vm428 = vcmp.eq.s32.totalorder %v234, %v422
      %vm429 = vcmp.eq.s32.totalorder %v237, %v422
      %vm430 = vcmp.eq.s32.totalorder %v240, %v422
      %vm431 = vcmp.eq.s32.totalorder %v243, %v422
      %vm432 = vcmp.eq.s32.totalorder %v246, %v422
      %vm433 = vcmp.eq.s32.totalorder %v249, %v422
      %vm434 = vcmp.eq.s32.totalorder %v252, %v422
      %vm435 = vcmp.eq.s32.totalorder %v255, %v422
      %vm436 = vcmp.eq.s32.totalorder %v258, %v422
      %vm437 = vcmp.eq.s32.totalorder %v261, %v422
      %vm438 = vcmp.eq.s32.totalorder %v264, %v422
      %v439 = vsub.f32 %v152, %v294
      %v440 = vsub.f32 %v155, %v295
      %v441 = vsub.f32 %v158, %v296
      %v442 = vsub.f32 %v161, %v297
      %v443 = vsub.f32 %v164, %v298
      %v444 = vsub.f32 %v167, %v299
      %v445 = vsub.f32 %v170, %v300
      %v446 = vsub.f32 %v173, %v301
      %v447 = vsub.f32 %v176, %v302
      %v448 = vsub.f32 %v179, %v303
      %v449 = vsub.f32 %v182, %v304
      %v450 = vsub.f32 %v185, %v305
      %v451 = vsub.f32 %v188, %v306
      %v452 = vsub.f32 %v191, %v307
      %v453 = vsub.f32 %v194, %v308
      %v454 = vsub.f32 %v197, %v309
      %v455 = vmul.f32 %v439, 1.442695
      %v456 = vpow.pop %v455
      %v457 = vmul.f32 %v440, 1.442695
      %v458 = vpow.pop %v457
      %v459 = vmul.f32 %v441, 1.442695
      %v460 = vpow.pop %v459
      %v461 = vmul.f32 %v442, 1.442695
      %v462 = vpow.pop %v461
      %v463 = vmul.f32 %v443, 1.442695
      %v464 = vpow.pop %v463
      %v465 = vmul.f32 %v444, 1.442695
      %v466 = vpow.pop %v465
      %v467 = vmul.f32 %v445, 1.442695
      %v468 = vpow.pop %v467
      %v469 = vmul.f32 %v446, 1.442695
      %v470 = vpow.pop %v469
      %v471 = vmul.f32 %v447, 1.442695
      %v472 = vpow.pop %v471
      %v473 = vmul.f32 %v448, 1.442695
      %v474 = vpow.pop %v473
      %v475 = vmul.f32 %v449, 1.442695
      %v476 = vpow.pop %v475
      %v477 = vmul.f32 %v450, 1.442695
      %v478 = vpow.pop %v477
      %v479 = vmul.f32 %v451, 1.442695
      %v480 = vpow.pop %v479
      %v481 = vmul.f32 %v452, 1.442695
      %v482 = vpow.pop %v481
      %v483 = vmul.f32 %v453, 1.442695
      %v484 = vpow.pop %v483
      %v485 = vmul.f32 %v454, 1.442695
      %v486 = vpow.pop %v485
      %v487 = vsel %vm423, 1.0, 0.0
      %v488 = vsel %vm424, 1.0, 0.0
      %v489 = vsel %vm425, 1.0, 0.0
      %v490 = vsel %vm426, 1.0, 0.0
      %v491 = vsel %vm427, 1.0, 0.0
      %v492 = vsel %vm428, 1.0, 0.0
      %v493 = vsel %vm429, 1.0, 0.0
      %v494 = vsel %vm430, 1.0, 0.0
      %v495 = vsel %vm431, 1.0, 0.0
      %v496 = vsel %vm432, 1.0, 0.0
      %v497 = vsel %vm433, 1.0, 0.0
      %v498 = vsel %vm434, 1.0, 0.0
      %v499 = vsel %vm435, 1.0, 0.0
      %v500 = vsel %vm436, 1.0, 0.0
      %v501 = vsel %vm437, 1.0, 0.0
      %v502 = vsel %vm438, 1.0, 0.0
      %v503 = vadd.f32 %v374, %v456
      %v504 = vadd.f32 %v375, %v458
      %v505 = vadd.f32 %v376, %v460
      %v506 = vadd.f32 %v377, %v462
      %v507 = vadd.f32 %v378, %v464
      %v508 = vadd.f32 %v379, %v466
      %v509 = vadd.f32 %v380, %v468
      %v510 = vadd.f32 %v381, %v470
      %v511 = vadd.f32 %v382, %v472
      %v512 = vadd.f32 %v383, %v474
      %v513 = vadd.f32 %v384, %v476
      %v514 = vadd.f32 %v385, %v478
      %v515 = vadd.f32 %v386, %v480
      %v516 = vadd.f32 %v387, %v482
      %v517 = vadd.f32 %v388, %v484
      %v518 = vadd.f32 %v389, %v486
      %v519 = vmul.f32 %v487, %v152
      %v520 = vmul.f32 %v488, %v155
      %v521 = vmul.f32 %v489, %v158
      %v522 = vmul.f32 %v490, %v161
      %v523 = vmul.f32 %v491, %v164
      %v524 = vmul.f32 %v492, %v167
      %v525 = vmul.f32 %v493, %v170
      %v526 = vmul.f32 %v494, %v173
      %v527 = vmul.f32 %v495, %v176
      %v528 = vmul.f32 %v496, %v179
      %v529 = vmul.f32 %v497, %v182
      %v530 = vmul.f32 %v498, %v185
      %v531 = vmul.f32 %v499, %v188
      %v532 = vmul.f32 %v500, %v191
      %v533 = vmul.f32 %v501, %v194
      %v534 = vmul.f32 %v502, %v197
      %v535 = vadd.f32 %v390, %v519
      %v536 = vadd.f32 %v391, %v520
      %v537 = vadd.f32 %v392, %v521
      %v538 = vadd.f32 %v393, %v522
      %v539 = vadd.f32 %v394, %v523
      %v540 = vadd.f32 %v395, %v524
      %v541 = vadd.f32 %v396, %v525
      %v542 = vadd.f32 %v397, %v526
      %v543 = vadd.f32 %v398, %v527
      %v544 = vadd.f32 %v399, %v528
      %v545 = vadd.f32 %v400, %v529
      %v546 = vadd.f32 %v401, %v530
      %v547 = vadd.f32 %v402, %v531
      %v548 = vadd.f32 %v403, %v532
      %v549 = vadd.f32 %v404, %v533
      %v550 = vadd.f32 %v405, %v534
      %v551 = vadd.f32 %v406, %v487
      %v552 = vadd.f32 %v407, %v488
      %v553 = vadd.f32 %v408, %v489
      %v554 = vadd.f32 %v409, %v490
      %v555 = vadd.f32 %v410, %v491
      %v556 = vadd.f32 %v411, %v492
      %v557 = vadd.f32 %v412, %v493
      %v558 = vadd.f32 %v413, %v494
      %v559 = vadd.f32 %v414, %v495
      %v560 = vadd.f32 %v415, %v496
      %v561 = vadd.f32 %v416, %v497
      %v562 = vadd.f32 %v417, %v498
      %v563 = vadd.f32 %v418, %v499
      %v564 = vadd.f32 %v419, %v500
      %v565 = vadd.f32 %v420, %v501
      %v566 = vadd.f32 %v421, %v502
      %567 = vst [vmem:[#allocation2] sm:$0xff] %v294
      %568 = vst [vmem:[#allocation2 + $0x8] sm:$0xff] %v295
      %569 = vst [vmem:[#allocation2 + $0x10] sm:$0xff] %v296
      %570 = vst [vmem:[#allocation2 + $0x18] sm:$0xff] %v297
      %571 = vst [vmem:[#allocation2 + $0x20] sm:$0xff] %v298
      %572 = vst [vmem:[#allocation2 + $0x28] sm:$0xff] %v299
      %573 = vst [vmem:[#allocation2 + $0x30] sm:$0xff] %v300
      %574 = vst [vmem:[#allocation2 + $0x38] sm:$0xff] %v301
      %575 = vst [vmem:[#allocation2 + $0x40] sm:$0xff] %v302
      %576 = vst [vmem:[#allocation2 + $0x48] sm:$0xff] %v303
      %577 = vst [vmem:[#allocation2 + $0x50] sm:$0xff] %v304
      %578 = vst [vmem:[#allocation2 + $0x58] sm:$0xff] %v305
      %579 = vst [vmem:[#allocation2 + $0x60] sm:$0xff] %v306
      %580 = vst [vmem:[#allocation2 + $0x68] sm:$0xff] %v307
      %581 = vst [vmem:[#allocation2 + $0x70] sm:$0xff] %v308
      %582 = vst [vmem:[#allocation2 + $0x78] sm:$0xff] %v309
      %583 = vst [vmem:[#allocation3] sm:$0xff] %v503
      %584 = vst [vmem:[#allocation3 + $0x8] sm:$0xff] %v504
      %585 = vst [vmem:[#allocation3 + $0x10] sm:$0xff] %v505
      %586 = vst [vmem:[#allocation3 + $0x18] sm:$0xff] %v506
      %587 = vst [vmem:[#allocation3 + $0x20] sm:$0xff] %v507
      %588 = vst [vmem:[#allocation3 + $0x28] sm:$0xff] %v508
      %589 = vst [vmem:[#allocation3 + $0x30] sm:$0xff] %v509
      %590 = vst [vmem:[#allocation3 + $0x38] sm:$0xff] %v510
      %591 = vst [vmem:[#allocation3 + $0x40] sm:$0xff] %v511
      %592 = vst [vmem:[#allocation3 + $0x48] sm:$0xff] %v512
      %593 = vst [vmem:[#allocation3 + $0x50] sm:$0xff] %v513
      %594 = vst [vmem:[#allocation3 + $0x58] sm:$0xff] %v514
      %595 = vst [vmem:[#allocation3 + $0x60] sm:$0xff] %v515
      %596 = vst [vmem:[#allocation3 + $0x68] sm:$0xff] %v516
      %597 = vst [vmem:[#allocation3 + $0x70] sm:$0xff] %v517
      %598 = vst [vmem:[#allocation3 + $0x78] sm:$0xff] %v518
      %599 = vst [vmem:[#allocation4] sm:$0xff] %v535
      %600 = vst [vmem:[#allocation4 + $0x8] sm:$0xff] %v536
      %601 = vst [vmem:[#allocation4 + $0x10] sm:$0xff] %v537
      %602 = vst [vmem:[#allocation4 + $0x18] sm:$0xff] %v538
      %603 = vst [vmem:[#allocation4 + $0x20] sm:$0xff] %v539
      %604 = vst [vmem:[#allocation4 + $0x28] sm:$0xff] %v540
      %605 = vst [vmem:[#allocation4 + $0x30] sm:$0xff] %v541
      %606 = vst [vmem:[#allocation4 + $0x38] sm:$0xff] %v542
      %607 = vst [vmem:[#allocation4 + $0x40] sm:$0xff] %v543
      %608 = vst [vmem:[#allocation4 + $0x48] sm:$0xff] %v544
      %609 = vst [vmem:[#allocation4 + $0x50] sm:$0xff] %v545
      %610 = vst [vmem:[#allocation4 + $0x58] sm:$0xff] %v546
      %611 = vst [vmem:[#allocation4 + $0x60] sm:$0xff] %v547
      %612 = vst [vmem:[#allocation4 + $0x68] sm:$0xff] %v548
      %613 = vst [vmem:[#allocation4 + $0x70] sm:$0xff] %v549
      %614 = vst [vmem:[#allocation4 + $0x78] sm:$0xff] %v550
      %615 = vst [vmem:[#allocation5] sm:$0xff] %v551
      %616 = vst [vmem:[#allocation5 + $0x8] sm:$0xff] %v552
      %617 = vst [vmem:[#allocation5 + $0x10] sm:$0xff] %v553
      %618 = vst [vmem:[#allocation5 + $0x18] sm:$0xff] %v554
      %619 = vst [vmem:[#allocation5 + $0x20] sm:$0xff] %v555
      %620 = vst [vmem:[#allocation5 + $0x28] sm:$0xff] %v556
      %621 = vst [vmem:[#allocation5 + $0x30] sm:$0xff] %v557
      %622 = vst [vmem:[#allocation5 + $0x38] sm:$0xff] %v558
      %623 = vst [vmem:[#allocation5 + $0x40] sm:$0xff] %v559
      %624 = vst [vmem:[#allocation5 + $0x48] sm:$0xff] %v560
      %625 = vst [vmem:[#allocation5 + $0x50] sm:$0xff] %v561
      %626 = vst [vmem:[#allocation5 + $0x58] sm:$0xff] %v562
      %627 = vst [vmem:[#allocation5 + $0x60] sm:$0xff] %v563
      %628 = vst [vmem:[#allocation5 + $0x68] sm:$0xff] %v564
      %629 = vst [vmem:[#allocation5 + $0x70] sm:$0xff] %v565
      %630 = vst [vmem:[#allocation5 + $0x78] sm:$0xff] %v566
    $region29: #{tpu_custom_call.1} parent=1 // pred_fallthru
      _
    %p631 = pnand %p271, %p272
    %p632 = pneg %p631
    // Predicated region
    $region30: #{tpu_custom_call.1} parent=1 // pred_check
      _
    $region31: #{tpu_custom_call.1} parent=1 // pred_check_branch
      %634 = sbr.rel (%p631) target = $region33
    $region32: #{tpu_custom_call.1} parent=1 // pred_region
      %v635 = vlaneseq
      %v636 = vshrl.u32 %v635, 7
      %v637 = vadd.s32 %v636, 8
      %v638 = vadd.s32 %v636, 16
      %v639 = vadd.s32 %v636, 24
      %v640 = vadd.s32 %v636, 32
      %v641 = vadd.s32 %v636, 40
      %v642 = vadd.s32 %v636, 48
      %v643 = vadd.s32 %v636, 56
      %v644 = vadd.s32 %v636, 64
      %v645 = vadd.s32 %v636, 72
      %v646 = vadd.s32 %v636, 80
      %v647 = vadd.s32 %v636, 88
      %v648 = vadd.s32 %v636, 96
      %v649 = vadd.s32 %v636, 104
      %v650 = vadd.s32 %v636, 112
      %v651 = vadd.s32 %v636, 120
      %v652 = vstv %s199
      %v653 = vadd.s32 %v652, %v636
      %v654 = vadd.s32 %v652, %v637
      %v655 = vadd.s32 %v652, %v638
      %v656 = vadd.s32 %v652, %v639
      %v657 = vadd.s32 %v652, %v640
      %v658 = vadd.s32 %v652, %v641
      %v659 = vadd.s32 %v652, %v642
      %v660 = vadd.s32 %v652, %v643
      %v661 = vadd.s32 %v652, %v644
      %v662 = vadd.s32 %v652, %v645
      %v663 = vadd.s32 %v652, %v646
      %v664 = vadd.s32 %v652, %v647
      %v665 = vadd.s32 %v652, %v648
      %v666 = vadd.s32 %v652, %v649
      %v667 = vadd.s32 %v652, %v650
      %v668 = vadd.s32 %v652, %v651
      %v669 = vlaneseq
      %v670 = vand.u32 %v669, 127
      %v671 = vld [vmem:[#allocation2] sm:$0xff]
      %v672 = vld [vmem:[#allocation2 + $0x8] sm:$0xff]
      %v673 = vld [vmem:[#allocation2 + $0x10] sm:$0xff]
      %v674 = vld [vmem:[#allocation2 + $0x18] sm:$0xff]
      %v675 = vld [vmem:[#allocation2 + $0x20] sm:$0xff]
      %v676 = vld [vmem:[#allocation2 + $0x28] sm:$0xff]
      %v677 = vld [vmem:[#allocation2 + $0x30] sm:$0xff]
      %v678 = vld [vmem:[#allocation2 + $0x38] sm:$0xff]
      %v679 = vld [vmem:[#allocation2 + $0x40] sm:$0xff]
      %v680 = vld [vmem:[#allocation2 + $0x48] sm:$0xff]
      %v681 = vld [vmem:[#allocation2 + $0x50] sm:$0xff]
      %v682 = vld [vmem:[#allocation2 + $0x58] sm:$0xff]
      %v683 = vld [vmem:[#allocation2 + $0x60] sm:$0xff]
      %v684 = vld [vmem:[#allocation2 + $0x68] sm:$0xff]
      %v685 = vld [vmem:[#allocation2 + $0x70] sm:$0xff]
      %v686 = vld [vmem:[#allocation2 + $0x78] sm:$0xff]
      %v687 = vmax.f32 %v671, %v152
      %v688 = vmax.f32 %v672, %v155
      %v689 = vmax.f32 %v673, %v158
      %v690 = vmax.f32 %v674, %v161
      %v691 = vmax.f32 %v675, %v164
      %v692 = vmax.f32 %v676, %v167
      %v693 = vmax.f32 %v677, %v170
      %v694 = vmax.f32 %v678, %v173
      %v695 = vmax.f32 %v679, %v176
      %v696 = vmax.f32 %v680, %v179
      %v697 = vmax.f32 %v681, %v182
      %v698 = vmax.f32 %v682, %v185
      %v699 = vmax.f32 %v683, %v188
      %v700 = vmax.f32 %v684, %v191
      %v701 = vmax.f32 %v685, %v194
      %v702 = vmax.f32 %v686, %v197
      %v703 = vsub.f32 %v671, %v687
      %v704 = vsub.f32 %v672, %v688
      %v705 = vsub.f32 %v673, %v689
      %v706 = vsub.f32 %v674, %v690
      %v707 = vsub.f32 %v675, %v691
      %v708 = vsub.f32 %v676, %v692
      %v709 = vsub.f32 %v677, %v693
      %v710 = vsub.f32 %v678, %v694
      %v711 = vsub.f32 %v679, %v695
      %v712 = vsub.f32 %v680, %v696
      %v713 = vsub.f32 %v681, %v697
      %v714 = vsub.f32 %v682, %v698
      %v715 = vsub.f32 %v683, %v699
      %v716 = vsub.f32 %v684, %v700
      %v717 = vsub.f32 %v685, %v701
      %v718 = vsub.f32 %v686, %v702
      %v719 = vmul.f32 %v703, 1.442695
      %v720 = vpow.pop %v719
      %v721 = vmul.f32 %v704, 1.442695
      %v722 = vpow.pop %v721
      %v723 = vmul.f32 %v705, 1.442695
      %v724 = vpow.pop %v723
      %v725 = vmul.f32 %v706, 1.442695
      %v726 = vpow.pop %v725
      %v727 = vmul.f32 %v707, 1.442695
      %v728 = vpow.pop %v727
      %v729 = vmul.f32 %v708, 1.442695
      %v730 = vpow.pop %v729
      %v731 = vmul.f32 %v709, 1.442695
      %v732 = vpow.pop %v731
      %v733 = vmul.f32 %v710, 1.442695
      %v734 = vpow.pop %v733
      %v735 = vmul.f32 %v711, 1.442695
      %v736 = vpow.pop %v735
      %v737 = vmul.f32 %v712, 1.442695
      %v738 = vpow.pop %v737
      %v739 = vmul.f32 %v713, 1.442695
      %v740 = vpow.pop %v739
      %v741 = vmul.f32 %v714, 1.442695
      %v742 = vpow.pop %v741
      %v743 = vmul.f32 %v715, 1.442695
      %v744 = vpow.pop %v743
      %v745 = vmul.f32 %v716, 1.442695
      %v746 = vpow.pop %v745
      %v747 = vmul.f32 %v717, 1.442695
      %v748 = vpow.pop %v747
      %v749 = vmul.f32 %v718, 1.442695
      %v750 = vpow.pop %v749
      %v751 = vld [vmem:[#allocation3] sm:$0xff]
      %v752 = vld [vmem:[#allocation3 + $0x8] sm:$0xff]
      %v753 = vld [vmem:[#allocation3 + $0x10] sm:$0xff]
      %v754 = vld [vmem:[#allocation3 + $0x18] sm:$0xff]
      %v755 = vld [vmem:[#allocation3 + $0x20] sm:$0xff]
      %v756 = vld [vmem:[#allocation3 + $0x28] sm:$0xff]
      %v757 = vld [vmem:[#allocation3 + $0x30] sm:$0xff]
      %v758 = vld [vmem:[#allocation3 + $0x38] sm:$0xff]
      %v759 = vld [vmem:[#allocation3 + $0x40] sm:$0xff]
      %v760 = vld [vmem:[#allocation3 + $0x48] sm:$0xff]
      %v761 = vld [vmem:[#allocation3 + $0x50] sm:$0xff]
      %v762 = vld [vmem:[#allocation3 + $0x58] sm:$0xff]
      %v763 = vld [vmem:[#allocation3 + $0x60] sm:$0xff]
      %v764 = vld [vmem:[#allocation3 + $0x68] sm:$0xff]
      %v765 = vld [vmem:[#allocation3 + $0x70] sm:$0xff]
      %v766 = vld [vmem:[#allocation3 + $0x78] sm:$0xff]
      %v767 = vmul.f32 %v720, %v751
      %v768 = vmul.f32 %v722, %v752
      %v769 = vmul.f32 %v724, %v753
      %v770 = vmul.f32 %v726, %v754
      %v771 = vmul.f32 %v728, %v755
      %v772 = vmul.f32 %v730, %v756
      %v773 = vmul.f32 %v732, %v757
      %v774 = vmul.f32 %v734, %v758
      %v775 = vmul.f32 %v736, %v759
      %v776 = vmul.f32 %v738, %v760
      %v777 = vmul.f32 %v740, %v761
      %v778 = vmul.f32 %v742, %v762
      %v779 = vmul.f32 %v744, %v763
      %v780 = vmul.f32 %v746, %v764
      %v781 = vmul.f32 %v748, %v765
      %v782 = vmul.f32 %v750, %v766
      %v783 = vld [vmem:[#allocation4] sm:$0xff]
      %v784 = vld [vmem:[#allocation4 + $0x8] sm:$0xff]
      %v785 = vld [vmem:[#allocation4 + $0x10] sm:$0xff]
      %v786 = vld [vmem:[#allocation4 + $0x18] sm:$0xff]
      %v787 = vld [vmem:[#allocation4 + $0x20] sm:$0xff]
      %v788 = vld [vmem:[#allocation4 + $0x28] sm:$0xff]
      %v789 = vld [vmem:[#allocation4 + $0x30] sm:$0xff]
      %v790 = vld [vmem:[#allocation4 + $0x38] sm:$0xff]
      %v791 = vld [vmem:[#allocation4 + $0x40] sm:$0xff]
      %v792 = vld [vmem:[#allocation4 + $0x48] sm:$0xff]
      %v793 = vld [vmem:[#allocation4 + $0x50] sm:$0xff]
      %v794 = vld [vmem:[#allocation4 + $0x58] sm:$0xff]
      %v795 = vld [vmem:[#allocation4 + $0x60] sm:$0xff]
      %v796 = vld [vmem:[#allocation4 + $0x68] sm:$0xff]
      %v797 = vld [vmem:[#allocation4 + $0x70] sm:$0xff]
      %v798 = vld [vmem:[#allocation4 + $0x78] sm:$0xff]
      %v799 = vld [vmem:[#allocation5] sm:$0xff]
      %v800 = vld [vmem:[#allocation5 + $0x8] sm:$0xff]
      %v801 = vld [vmem:[#allocation5 + $0x10] sm:$0xff]
      %v802 = vld [vmem:[#allocation5 + $0x18] sm:$0xff]
      %v803 = vld [vmem:[#allocation5 + $0x20] sm:$0xff]
      %v804 = vld [vmem:[#allocation5 + $0x28] sm:$0xff]
      %v805 = vld [vmem:[#allocation5 + $0x30] sm:$0xff]
      %v806 = vld [vmem:[#allocation5 + $0x38] sm:$0xff]
      %v807 = vld [vmem:[#allocation5 + $0x40] sm:$0xff]
      %v808 = vld [vmem:[#allocation5 + $0x48] sm:$0xff]
      %v809 = vld [vmem:[#allocation5 + $0x50] sm:$0xff]
      %v810 = vld [vmem:[#allocation5 + $0x58] sm:$0xff]
      %v811 = vld [vmem:[#allocation5 + $0x60] sm:$0xff]
      %v812 = vld [vmem:[#allocation5 + $0x68] sm:$0xff]
      %v813 = vld [vmem:[#allocation5 + $0x70] sm:$0xff]
      %v814 = vld [vmem:[#allocation5 + $0x78] sm:$0xff]
      %v815 = vperm.slane %v265, 0
      %vm816 = vcmp.eq.s32.totalorder %v219, %v815
      %vm817 = vcmp.eq.s32.totalorder %v222, %v815
      %vm818 = vcmp.eq.s32.totalorder %v225, %v815
      %vm819 = vcmp.eq.s32.totalorder %v228, %v815
      %vm820 = vcmp.eq.s32.totalorder %v231, %v815
      %vm821 = vcmp.eq.s32.totalorder %v234, %v815
      %vm822 = vcmp.eq.s32.totalorder %v237, %v815
      %vm823 = vcmp.eq.s32.totalorder %v240, %v815
      %vm824 = vcmp.eq.s32.totalorder %v243, %v815
      %vm825 = vcmp.eq.s32.totalorder %v246, %v815
      %vm826 = vcmp.eq.s32.totalorder %v249, %v815
      %vm827 = vcmp.eq.s32.totalorder %v252, %v815
      %vm828 = vcmp.eq.s32.totalorder %v255, %v815
      %vm829 = vcmp.eq.s32.totalorder %v258, %v815
      %vm830 = vcmp.eq.s32.totalorder %v261, %v815
      %vm831 = vcmp.eq.s32.totalorder %v264, %v815
      %v832 = vsub.f32 %v152, %v687
      %v833 = vsub.f32 %v155, %v688
      %v834 = vsub.f32 %v158, %v689
      %v835 = vsub.f32 %v161, %v690
      %v836 = vsub.f32 %v164, %v691
      %v837 = vsub.f32 %v167, %v692
      %v838 = vsub.f32 %v170, %v693
      %v839 = vsub.f32 %v173, %v694
      %v840 = vsub.f32 %v176, %v695
      %v841 = vsub.f32 %v179, %v696
      %v842 = vsub.f32 %v182, %v697
      %v843 = vsub.f32 %v185, %v698
      %v844 = vsub.f32 %v188, %v699
      %v845 = vsub.f32 %v191, %v700
      %v846 = vsub.f32 %v194, %v701
      %v847 = vsub.f32 %v197, %v702
      %v848 = vmul.f32 %v832, 1.442695
      %v849 = vpow.pop %v848
      %v850 = vmul.f32 %v833, 1.442695
      %v851 = vpow.pop %v850
      %v852 = vmul.f32 %v834, 1.442695
      %v853 = vpow.pop %v852
      %v854 = vmul.f32 %v835, 1.442695
      %v855 = vpow.pop %v854
      %v856 = vmul.f32 %v836, 1.442695
      %v857 = vpow.pop %v856
      %v858 = vmul.f32 %v837, 1.442695
      %v859 = vpow.pop %v858
      %v860 = vmul.f32 %v838, 1.442695
      %v861 = vpow.pop %v860
      %v862 = vmul.f32 %v839, 1.442695
      %v863 = vpow.pop %v862
      %v864 = vmul.f32 %v840, 1.442695
      %v865 = vpow.pop %v864
      %v866 = vmul.f32 %v841, 1.442695
      %v867 = vpow.pop %v866
      %v868 = vmul.f32 %v842, 1.442695
      %v869 = vpow.pop %v868
      %v870 = vmul.f32 %v843, 1.442695
      %v871 = vpow.pop %v870
      %v872 = vmul.f32 %v844, 1.442695
      %v873 = vpow.pop %v872
      %v874 = vmul.f32 %v845, 1.442695
      %v875 = vpow.pop %v874
      %v876 = vmul.f32 %v846, 1.442695
      %v877 = vpow.pop %v876
      %v878 = vmul.f32 %v847, 1.442695
      %v879 = vpow.pop %v878
      %v880 = vstv %s200
      %v881 = vadd.s32 %v880, %v670
      %vm882 = vcmp.ne.s32.totalorder %v653, %v881
      %vm883 = vcmp.ne.s32.totalorder %v654, %v881
      %vm884 = vcmp.ne.s32.totalorder %v655, %v881
      %vm885 = vcmp.ne.s32.totalorder %v656, %v881
      %vm886 = vcmp.ne.s32.totalorder %v657, %v881
      %vm887 = vcmp.ne.s32.totalorder %v658, %v881
      %vm888 = vcmp.ne.s32.totalorder %v659, %v881
      %vm889 = vcmp.ne.s32.totalorder %v660, %v881
      %vm890 = vcmp.ne.s32.totalorder %v661, %v881
      %vm891 = vcmp.ne.s32.totalorder %v662, %v881
      %vm892 = vcmp.ne.s32.totalorder %v663, %v881
      %vm893 = vcmp.ne.s32.totalorder %v664, %v881
      %vm894 = vcmp.ne.s32.totalorder %v665, %v881
      %vm895 = vcmp.ne.s32.totalorder %v666, %v881
      %vm896 = vcmp.ne.s32.totalorder %v667, %v881
      %vm897 = vcmp.ne.s32.totalorder %v668, %v881
      %v898 = vsel %vm882, %v849, 0.0
      %v899 = vsel %vm883, %v851, 0.0
      %v900 = vsel %vm884, %v853, 0.0
      %v901 = vsel %vm885, %v855, 0.0
      %v902 = vsel %vm886, %v857, 0.0
      %v903 = vsel %vm887, %v859, 0.0
      %v904 = vsel %vm888, %v861, 0.0
      %v905 = vsel %vm889, %v863, 0.0
      %v906 = vsel %vm890, %v865, 0.0
      %v907 = vsel %vm891, %v867, 0.0
      %v908 = vsel %vm892, %v869, 0.0
      %v909 = vsel %vm893, %v871, 0.0
      %v910 = vsel %vm894, %v873, 0.0
      %v911 = vsel %vm895, %v875, 0.0
      %v912 = vsel %vm896, %v877, 0.0
      %v913 = vsel %vm897, %v879, 0.0
      %vm914 = vmand %vm816, %vm882
      %vm915 = vmand %vm817, %vm883
      %vm916 = vmand %vm818, %vm884
      %vm917 = vmand %vm819, %vm885
      %vm918 = vmand %vm820, %vm886
      %vm919 = vmand %vm821, %vm887
      %vm920 = vmand %vm822, %vm888
      %vm921 = vmand %vm823, %vm889
      %vm922 = vmand %vm824, %vm890
      %vm923 = vmand %vm825, %vm891
      %vm924 = vmand %vm826, %vm892
      %vm925 = vmand %vm827, %vm893
      %vm926 = vmand %vm828, %vm894
      %vm927 = vmand %vm829, %vm895
      %vm928 = vmand %vm830, %vm896
      %vm929 = vmand %vm831, %vm897
      %v930 = vsel %vm914, 1.0, 0.0
      %v931 = vsel %vm915, 1.0, 0.0
      %v932 = vsel %vm916, 1.0, 0.0
      %v933 = vsel %vm917, 1.0, 0.0
      %v934 = vsel %vm918, 1.0, 0.0
      %v935 = vsel %vm919, 1.0, 0.0
      %v936 = vsel %vm920, 1.0, 0.0
      %v937 = vsel %vm921, 1.0, 0.0
      %v938 = vsel %vm922, 1.0, 0.0
      %v939 = vsel %vm923, 1.0, 0.0
      %v940 = vsel %vm924, 1.0, 0.0
      %v941 = vsel %vm925, 1.0, 0.0
      %v942 = vsel %vm926, 1.0, 0.0
      %v943 = vsel %vm927, 1.0, 0.0
      %v944 = vsel %vm928, 1.0, 0.0
      %v945 = vsel %vm929, 1.0, 0.0
      %v946 = vadd.f32 %v767, %v898
      %v947 = vadd.f32 %v768, %v899
      %v948 = vadd.f32 %v769, %v900
      %v949 = vadd.f32 %v770, %v901
      %v950 = vadd.f32 %v771, %v902
      %v951 = vadd.f32 %v772, %v903
      %v952 = vadd.f32 %v773, %v904
      %v953 = vadd.f32 %v774, %v905
      %v954 = vadd.f32 %v775, %v906
      %v955 = vadd.f32 %v776, %v907
      %v956 = vadd.f32 %v777, %v908
      %v957 = vadd.f32 %v778, %v909
      %v958 = vadd.f32 %v779, %v910
      %v959 = vadd.f32 %v780, %v911
      %v960 = vadd.f32 %v781, %v912
      %v961 = vadd.f32 %v782, %v913
      %v962 = vmul.f32 %v930, %v152
      %v963 = vmul.f32 %v931, %v155
      %v964 = vmul.f32 %v932, %v158
      %v965 = vmul.f32 %v933, %v161
      %v966 = vmul.f32 %v934, %v164
      %v967 = vmul.f32 %v935, %v167
      %v968 = vmul.f32 %v936, %v170
      %v969 = vmul.f32 %v937, %v173
      %v970 = vmul.f32 %v938, %v176
      %v971 = vmul.f32 %v939, %v179
      %v972 = vmul.f32 %v940, %v182
      %v973 = vmul.f32 %v941, %v185
      %v974 = vmul.f32 %v942, %v188
      %v975 = vmul.f32 %v943, %v191
      %v976 = vmul.f32 %v944, %v194
      %v977 = vmul.f32 %v945, %v197
      %v978 = vadd.f32 %v783, %v962
      %v979 = vadd.f32 %v784, %v963
      %v980 = vadd.f32 %v785, %v964
      %v981 = vadd.f32 %v786, %v965
      %v982 = vadd.f32 %v787, %v966
      %v983 = vadd.f32 %v788, %v967
      %v984 = vadd.f32 %v789, %v968
      %v985 = vadd.f32 %v790, %v969
      %v986 = vadd.f32 %v791, %v970
      %v987 = vadd.f32 %v792, %v971
      %v988 = vadd.f32 %v793, %v972
      %v989 = vadd.f32 %v794, %v973
      %v990 = vadd.f32 %v795, %v974
      %v991 = vadd.f32 %v796, %v975
      %v992 = vadd.f32 %v797, %v976
      %v993 = vadd.f32 %v798, %v977
      %v994 = vadd.f32 %v799, %v930
      %v995 = vadd.f32 %v800, %v931
      %v996 = vadd.f32 %v801, %v932
      %v997 = vadd.f32 %v802, %v933
      %v998 = vadd.f32 %v803, %v934
      %v999 = vadd.f32 %v804, %v935
      %v1000 = vadd.f32 %v805, %v936
      %v1001 = vadd.f32 %v806, %v937
      %v1002 = vadd.f32 %v807, %v938
      %v1003 = vadd.f32 %v808, %v939
      %v1004 = vadd.f32 %v809, %v940
      %v1005 = vadd.f32 %v810, %v941
      %v1006 = vadd.f32 %v811, %v942
      %v1007 = vadd.f32 %v812, %v943
      %v1008 = vadd.f32 %v813, %v944
      %v1009 = vadd.f32 %v814, %v945
      %1010 = vst [vmem:[#allocation2] sm:$0xff] %v687
      %1011 = vst [vmem:[#allocation2 + $0x8] sm:$0xff] %v688
      %1012 = vst [vmem:[#allocation2 + $0x10] sm:$0xff] %v689
      %1013 = vst [vmem:[#allocation2 + $0x18] sm:$0xff] %v690
      %1014 = vst [vmem:[#allocation2 + $0x20] sm:$0xff] %v691
      %1015 = vst [vmem:[#allocation2 + $0x28] sm:$0xff] %v692
      %1016 = vst [vmem:[#allocation2 + $0x30] sm:$0xff] %v693
      %1017 = vst [vmem:[#allocation2 + $0x38] sm:$0xff] %v694
      %1018 = vst [vmem:[#allocation2 + $0x40] sm:$0xff] %v695
      %1019 = vst [vmem:[#allocation2 + $0x48] sm:$0xff] %v696
      %1020 = vst [vmem:[#allocation2 + $0x50] sm:$0xff] %v697
      %1021 = vst [vmem:[#allocation2 + $0x58] sm:$0xff] %v698
      %1022 = vst [vmem:[#allocation2 + $0x60] sm:$0xff] %v699
      %1023 = vst [vmem:[#allocation2 + $0x68] sm:$0xff] %v700
      %1024 = vst [vmem:[#allocation2 + $0x70] sm:$0xff] %v701
      %1025 = vst [vmem:[#allocation2 + $0x78] sm:$0xff] %v702
      %1026 = vst [vmem:[#allocation3] sm:$0xff] %v946
      %1027 = vst [vmem:[#allocation3 + $0x8] sm:$0xff] %v947
      %1028 = vst [vmem:[#allocation3 + $0x10] sm:$0xff] %v948
      %1029 = vst [vmem:[#allocation3 + $0x18] sm:$0xff] %v949
      %1030 = vst [vmem:[#allocation3 + $0x20] sm:$0xff] %v950
      %1031 = vst [vmem:[#allocation3 + $0x28] sm:$0xff] %v951
      %1032 = vst [vmem:[#allocation3 + $0x30] sm:$0xff] %v952
      %1033 = vst [vmem:[#allocation3 + $0x38] sm:$0xff] %v953
      %1034 = vst [vmem:[#allocation3 + $0x40] sm:$0xff] %v954
      %1035 = vst [vmem:[#allocation3 + $0x48] sm:$0xff] %v955
      %1036 = vst [vmem:[#allocation3 + $0x50] sm:$0xff] %v956
      %1037 = vst [vmem:[#allocation3 + $0x58] sm:$0xff] %v957
      %1038 = vst [vmem:[#allocation3 + $0x60] sm:$0xff] %v958
      %1039 = vst [vmem:[#allocation3 + $0x68] sm:$0xff] %v959
      %1040 = vst [vmem:[#allocation3 + $0x70] sm:$0xff] %v960
      %1041 = vst [vmem:[#allocation3 + $0x78] sm:$0xff] %v961
      %1042 = vst [vmem:[#allocation4] sm:$0xff] %v978
      %1043 = vst [vmem:[#allocation4 + $0x8] sm:$0xff] %v979
      %1044 = vst [vmem:[#allocation4 + $0x10] sm:$0xff] %v980
      %1045 = vst [vmem:[#allocation4 + $0x18] sm:$0xff] %v981
      %1046 = vst [vmem:[#allocation4 + $0x20] sm:$0xff] %v982
      %1047 = vst [vmem:[#allocation4 + $0x28] sm:$0xff] %v983
      %1048 = vst [vmem:[#allocation4 + $0x30] sm:$0xff] %v984
      %1049 = vst [vmem:[#allocation4 + $0x38] sm:$0xff] %v985
      %1050 = vst [vmem:[#allocation4 + $0x40] sm:$0xff] %v986
      %1051 = vst [vmem:[#allocation4 + $0x48] sm:$0xff] %v987
      %1052 = vst [vmem:[#allocation4 + $0x50] sm:$0xff] %v988
      %1053 = vst [vmem:[#allocation4 + $0x58] sm:$0xff] %v989
      %1054 = vst [vmem:[#allocation4 + $0x60] sm:$0xff] %v990
      %1055 = vst [vmem:[#allocation4 + $0x68] sm:$0xff] %v991
      %1056 = vst [vmem:[#allocation4 + $0x70] sm:$0xff] %v992
      %1057 = vst [vmem:[#allocation4 + $0x78] sm:$0xff] %v993
      %1058 = vst [vmem:[#allocation5] sm:$0xff] %v994
      %1059 = vst [vmem:[#allocation5 + $0x8] sm:$0xff] %v995
      %1060 = vst [vmem:[#allocation5 + $0x10] sm:$0xff] %v996
      %1061 = vst [vmem:[#allocation5 + $0x18] sm:$0xff] %v997
      %1062 = vst [vmem:[#allocation5 + $0x20] sm:$0xff] %v998
      %1063 = vst [vmem:[#allocation5 + $0x28] sm:$0xff] %v999
      %1064 = vst [vmem:[#allocation5 + $0x30] sm:$0xff] %v1000
      %1065 = vst [vmem:[#allocation5 + $0x38] sm:$0xff] %v1001
      %1066 = vst [vmem:[#allocation5 + $0x40] sm:$0xff] %v1002
      %1067 = vst [vmem:[#allocation5 + $0x48] sm:$0xff] %v1003
      %1068 = vst [vmem:[#allocation5 + $0x50] sm:$0xff] %v1004
      %1069 = vst [vmem:[#allocation5 + $0x58] sm:$0xff] %v1005
      %1070 = vst [vmem:[#allocation5 + $0x60] sm:$0xff] %v1006
      %1071 = vst [vmem:[#allocation5 + $0x68] sm:$0xff] %v1007
      %1072 = vst [vmem:[#allocation5 + $0x70] sm:$0xff] %v1008
      %1073 = vst [vmem:[#allocation5 + $0x78] sm:$0xff] %v1009
    $region33: #{tpu_custom_call.1} parent=1 // pred_fallthru
      _
    // Predicated region
    $region34: #{tpu_custom_call.1} parent=1 // pred_check
      %p1074 = pneg %p34
    $region35: #{tpu_custom_call.1} parent=1 // pred_check_branch
      %1076 = sbr.rel (%p1074) target = $region37
    $region36: #{tpu_custom_call.1} parent=1 // pred_region
      %v1077 = vlaneseq
      %v1078 = vshrl.u32 %v1077, 7
      %v1079 = vadd.s32 %v1078, 8
      %v1080 = vadd.s32 %v1078, 16
      %v1081 = vadd.s32 %v1078, 24
      %v1082 = vadd.s32 %v1078, 32
      %v1083 = vadd.s32 %v1078, 40
      %v1084 = vadd.s32 %v1078, 48
      %v1085 = vadd.s32 %v1078, 56
      %v1086 = vadd.s32 %v1078, 64
      %v1087 = vadd.s32 %v1078, 72
      %v1088 = vadd.s32 %v1078, 80
      %v1089 = vadd.s32 %v1078, 88
      %v1090 = vadd.s32 %v1078, 96
      %v1091 = vadd.s32 %v1078, 104
      %v1092 = vadd.s32 %v1078, 112
      %v1093 = vadd.s32 %v1078, 120
      %v1094 = vstv %s199
      %v1095 = vadd.s32 %v1094, %v1078
      %v1096 = vadd.s32 %v1094, %v1079
      %v1097 = vadd.s32 %v1094, %v1080
      %v1098 = vadd.s32 %v1094, %v1081
      %v1099 = vadd.s32 %v1094, %v1082
      %v1100 = vadd.s32 %v1094, %v1083
      %v1101 = vadd.s32 %v1094, %v1084
      %v1102 = vadd.s32 %v1094, %v1085
      %v1103 = vadd.s32 %v1094, %v1086
      %v1104 = vadd.s32 %v1094, %v1087
      %v1105 = vadd.s32 %v1094, %v1088
      %v1106 = vadd.s32 %v1094, %v1089
      %v1107 = vadd.s32 %v1094, %v1090
      %v1108 = vadd.s32 %v1094, %v1091
      %v1109 = vadd.s32 %v1094, %v1092
      %v1110 = vadd.s32 %v1094, %v1093
      %v1111 = vlaneseq
      %v1112 = vand.u32 %v1111, 127
      %v1113 = vld [vmem:[#allocation2] sm:$0xff]
      %v1114 = vld [vmem:[#allocation2 + $0x8] sm:$0xff]
      %v1115 = vld [vmem:[#allocation2 + $0x10] sm:$0xff]
      %v1116 = vld [vmem:[#allocation2 + $0x18] sm:$0xff]
      %v1117 = vld [vmem:[#allocation2 + $0x20] sm:$0xff]
      %v1118 = vld [vmem:[#allocation2 + $0x28] sm:$0xff]
      %v1119 = vld [vmem:[#allocation2 + $0x30] sm:$0xff]
      %v1120 = vld [vmem:[#allocation2 + $0x38] sm:$0xff]
      %v1121 = vld [vmem:[#allocation2 + $0x40] sm:$0xff]
      %v1122 = vld [vmem:[#allocation2 + $0x48] sm:$0xff]
      %v1123 = vld [vmem:[#allocation2 + $0x50] sm:$0xff]
      %v1124 = vld [vmem:[#allocation2 + $0x58] sm:$0xff]
      %v1125 = vld [vmem:[#allocation2 + $0x60] sm:$0xff]
      %v1126 = vld [vmem:[#allocation2 + $0x68] sm:$0xff]
      %v1127 = vld [vmem:[#allocation2 + $0x70] sm:$0xff]
      %v1128 = vld [vmem:[#allocation2 + $0x78] sm:$0xff]
      %v1129 = vstv %s200
      %v1130 = vadd.s32 %v1129, %v1112
      %vm1131 = vcmp.lt.s32.totalorder %v1130, 8
      %v1132 = vsel %vm1131, %v152, -1e+30
      %v1133 = vsel %vm1131, %v155, -1e+30
      %v1134 = vsel %vm1131, %v158, -1e+30
      %v1135 = vsel %vm1131, %v161, -1e+30
      %v1136 = vsel %vm1131, %v164, -1e+30
      %v1137 = vsel %vm1131, %v167, -1e+30
      %v1138 = vsel %vm1131, %v170, -1e+30
      %v1139 = vsel %vm1131, %v173, -1e+30
      %v1140 = vsel %vm1131, %v176, -1e+30
      %v1141 = vsel %vm1131, %v179, -1e+30
      %v1142 = vsel %vm1131, %v182, -1e+30
      %v1143 = vsel %vm1131, %v185, -1e+30
      %v1144 = vsel %vm1131, %v188, -1e+30
      %v1145 = vsel %vm1131, %v191, -1e+30
      %v1146 = vsel %vm1131, %v194, -1e+30
      %v1147 = vsel %vm1131, %v197, -1e+30
      %v1148 = vmax.f32 %v1113, %v1132
      %v1149 = vmax.f32 %v1114, %v1133
      %v1150 = vmax.f32 %v1115, %v1134
      %v1151 = vmax.f32 %v1116, %v1135
      %v1152 = vmax.f32 %v1117, %v1136
      %v1153 = vmax.f32 %v1118, %v1137
      %v1154 = vmax.f32 %v1119, %v1138
      %v1155 = vmax.f32 %v1120, %v1139
      %v1156 = vmax.f32 %v1121, %v1140
      %v1157 = vmax.f32 %v1122, %v1141
      %v1158 = vmax.f32 %v1123, %v1142
      %v1159 = vmax.f32 %v1124, %v1143
      %v1160 = vmax.f32 %v1125, %v1144
      %v1161 = vmax.f32 %v1126, %v1145
      %v1162 = vmax.f32 %v1127, %v1146
      %v1163 = vmax.f32 %v1128, %v1147
      %v1164 = vsub.f32 %v1113, %v1148
      %v1165 = vsub.f32 %v1114, %v1149
      %v1166 = vsub.f32 %v1115, %v1150
      %v1167 = vsub.f32 %v1116, %v1151
      %v1168 = vsub.f32 %v1117, %v1152
      %v1169 = vsub.f32 %v1118, %v1153
      %v1170 = vsub.f32 %v1119, %v1154
      %v1171 = vsub.f32 %v1120, %v1155
      %v1172 = vsub.f32 %v1121, %v1156
      %v1173 = vsub.f32 %v1122, %v1157
      %v1174 = vsub.f32 %v1123, %v1158
      %v1175 = vsub.f32 %v1124, %v1159
      %v1176 = vsub.f32 %v1125, %v1160
      %v1177 = vsub.f32 %v1126, %v1161
      %v1178 = vsub.f32 %v1127, %v1162
      %v1179 = vsub.f32 %v1128, %v1163
      %v1180 = vmul.f32 %v1164, 1.442695
      %v1181 = vpow.pop %v1180
      %v1182 = vmul.f32 %v1165, 1.442695
      %v1183 = vpow.pop %v1182
      %v1184 = vmul.f32 %v1166, 1.442695
      %v1185 = vpow.pop %v1184
      %v1186 = vmul.f32 %v1167, 1.442695
      %v1187 = vpow.pop %v1186
      %v1188 = vmul.f32 %v1168, 1.442695
      %v1189 = vpow.pop %v1188
      %v1190 = vmul.f32 %v1169, 1.442695
      %v1191 = vpow.pop %v1190
      %v1192 = vmul.f32 %v1170, 1.442695
      %v1193 = vpow.pop %v1192
      %v1194 = vmul.f32 %v1171, 1.442695
      %v1195 = vpow.pop %v1194
      %v1196 = vmul.f32 %v1172, 1.442695
      %v1197 = vpow.pop %v1196
      %v1198 = vmul.f32 %v1173, 1.442695
      %v1199 = vpow.pop %v1198
      %v1200 = vmul.f32 %v1174, 1.442695
      %v1201 = vpow.pop %v1200
      %v1202 = vmul.f32 %v1175, 1.442695
      %v1203 = vpow.pop %v1202
      %v1204 = vmul.f32 %v1176, 1.442695
      %v1205 = vpow.pop %v1204
      %v1206 = vmul.f32 %v1177, 1.442695
      %v1207 = vpow.pop %v1206
      %v1208 = vmul.f32 %v1178, 1.442695
      %v1209 = vpow.pop %v1208
      %v1210 = vmul.f32 %v1179, 1.442695
      %v1211 = vpow.pop %v1210
      %v1212 = vld [vmem:[#allocation3] sm:$0xff]
      %v1213 = vld [vmem:[#allocation3 + $0x8] sm:$0xff]
      %v1214 = vld [vmem:[#allocation3 + $0x10] sm:$0xff]
      %v1215 = vld [vmem:[#allocation3 + $0x18] sm:$0xff]
      %v1216 = vld [vmem:[#allocation3 + $0x20] sm:$0xff]
      %v1217 = vld [vmem:[#allocation3 + $0x28] sm:$0xff]
      %v1218 = vld [vmem:[#allocation3 + $0x30] sm:$0xff]
      %v1219 = vld [vmem:[#allocation3 + $0x38] sm:$0xff]
      %v1220 = vld [vmem:[#allocation3 + $0x40] sm:$0xff]
      %v1221 = vld [vmem:[#allocation3 + $0x48] sm:$0xff]
      %v1222 = vld [vmem:[#allocation3 + $0x50] sm:$0xff]
      %v1223 = vld [vmem:[#allocation3 + $0x58] sm:$0xff]
      %v1224 = vld [vmem:[#allocation3 + $0x60] sm:$0xff]
      %v1225 = vld [vmem:[#allocation3 + $0x68] sm:$0xff]
      %v1226 = vld [vmem:[#allocation3 + $0x70] sm:$0xff]
      %v1227 = vld [vmem:[#allocation3 + $0x78] sm:$0xff]
      %v1228 = vmul.f32 %v1181, %v1212
      %v1229 = vmul.f32 %v1183, %v1213
      %v1230 = vmul.f32 %v1185, %v1214
      %v1231 = vmul.f32 %v1187, %v1215
      %v1232 = vmul.f32 %v1189, %v1216
      %v1233 = vmul.f32 %v1191, %v1217
      %v1234 = vmul.f32 %v1193, %v1218
      %v1235 = vmul.f32 %v1195, %v1219
      %v1236 = vmul.f32 %v1197, %v1220
      %v1237 = vmul.f32 %v1199, %v1221
      %v1238 = vmul.f32 %v1201, %v1222
      %v1239 = vmul.f32 %v1203, %v1223
      %v1240 = vmul.f32 %v1205, %v1224
      %v1241 = vmul.f32 %v1207, %v1225
      %v1242 = vmul.f32 %v1209, %v1226
      %v1243 = vmul.f32 %v1211, %v1227
      %v1244 = vld [vmem:[#allocation4] sm:$0xff]
      %v1245 = vld [vmem:[#allocation4 + $0x8] sm:$0xff]
      %v1246 = vld [vmem:[#allocation4 + $0x10] sm:$0xff]
      %v1247 = vld [vmem:[#allocation4 + $0x18] sm:$0xff]
      %v1248 = vld [vmem:[#allocation4 + $0x20] sm:$0xff]
      %v1249 = vld [vmem:[#allocation4 + $0x28] sm:$0xff]
      %v1250 = vld [vmem:[#allocation4 + $0x30] sm:$0xff]
      %v1251 = vld [vmem:[#allocation4 + $0x38] sm:$0xff]
      %v1252 = vld [vmem:[#allocation4 + $0x40] sm:$0xff]
      %v1253 = vld [vmem:[#allocation4 + $0x48] sm:$0xff]
      %v1254 = vld [vmem:[#allocation4 + $0x50] sm:$0xff]
      %v1255 = vld [vmem:[#allocation4 + $0x58] sm:$0xff]
      %v1256 = vld [vmem:[#allocation4 + $0x60] sm:$0xff]
      %v1257 = vld [vmem:[#allocation4 + $0x68] sm:$0xff]
      %v1258 = vld [vmem:[#allocation4 + $0x70] sm:$0xff]
      %v1259 = vld [vmem:[#allocation4 + $0x78] sm:$0xff]
      %v1260 = vld [vmem:[#allocation5] sm:$0xff]
      %v1261 = vld [vmem:[#allocation5 + $0x8] sm:$0xff]
      %v1262 = vld [vmem:[#allocation5 + $0x10] sm:$0xff]
      %v1263 = vld [vmem:[#allocation5 + $0x18] sm:$0xff]
      %v1264 = vld [vmem:[#allocation5 + $0x20] sm:$0xff]
      %v1265 = vld [vmem:[#allocation5 + $0x28] sm:$0xff]
      %v1266 = vld [vmem:[#allocation5 + $0x30] sm:$0xff]
      %v1267 = vld [vmem:[#allocation5 + $0x38] sm:$0xff]
      %v1268 = vld [vmem:[#allocation5 + $0x40] sm:$0xff]
      %v1269 = vld [vmem:[#allocation5 + $0x48] sm:$0xff]
      %v1270 = vld [vmem:[#allocation5 + $0x50] sm:$0xff]
      %v1271 = vld [vmem:[#allocation5 + $0x58] sm:$0xff]
      %v1272 = vld [vmem:[#allocation5 + $0x60] sm:$0xff]
      %v1273 = vld [vmem:[#allocation5 + $0x68] sm:$0xff]
      %v1274 = vld [vmem:[#allocation5 + $0x70] sm:$0xff]
      %v1275 = vld [vmem:[#allocation5 + $0x78] sm:$0xff]
      %v1276 = vperm.slane %v265, 0
      %vm1277 = vcmp.eq.s32.totalorder %v219, %v1276
      %vm1278 = vcmp.eq.s32.totalorder %v222, %v1276
      %vm1279 = vcmp.eq.s32.totalorder %v225, %v1276
      %vm1280 = vcmp.eq.s32.totalorder %v228, %v1276
      %vm1281 = vcmp.eq.s32.totalorder %v231, %v1276
      %vm1282 = vcmp.eq.s32.totalorder %v234, %v1276
      %vm1283 = vcmp.eq.s32.totalorder %v237, %v1276
      %vm1284 = vcmp.eq.s32.totalorder %v240, %v1276
      %vm1285 = vcmp.eq.s32.totalorder %v243, %v1276
      %vm1286 = vcmp.eq.s32.totalorder %v246, %v1276
      %vm1287 = vcmp.eq.s32.totalorder %v249, %v1276
      %vm1288 = vcmp.eq.s32.totalorder %v252, %v1276
      %vm1289 = vcmp.eq.s32.totalorder %v255, %v1276
      %vm1290 = vcmp.eq.s32.totalorder %v258, %v1276
      %vm1291 = vcmp.eq.s32.totalorder %v261, %v1276
      %vm1292 = vcmp.eq.s32.totalorder %v264, %v1276
      %v1293 = vsub.f32 %v152, %v1148
      %v1294 = vsub.f32 %v155, %v1149
      %v1295 = vsub.f32 %v158, %v1150
      %v1296 = vsub.f32 %v161, %v1151
      %v1297 = vsub.f32 %v164, %v1152
      %v1298 = vsub.f32 %v167, %v1153
      %v1299 = vsub.f32 %v170, %v1154
      %v1300 = vsub.f32 %v173, %v1155
      %v1301 = vsub.f32 %v176, %v1156
      %v1302 = vsub.f32 %v179, %v1157
      %v1303 = vsub.f32 %v182, %v1158
      %v1304 = vsub.f32 %v185, %v1159
      %v1305 = vsub.f32 %v188, %v1160
      %v1306 = vsub.f32 %v191, %v1161
      %v1307 = vsub.f32 %v194, %v1162
      %v1308 = vsub.f32 %v197, %v1163
      %v1309 = vmul.f32 %v1293, 1.442695
      %v1310 = vpow.pop %v1309
      %v1311 = vmul.f32 %v1294, 1.442695
      %v1312 = vpow.pop %v1311
      %v1313 = vmul.f32 %v1295, 1.442695
      %v1314 = vpow.pop %v1313
      %v1315 = vmul.f32 %v1296, 1.442695
      %v1316 = vpow.pop %v1315
      %v1317 = vmul.f32 %v1297, 1.442695
      %v1318 = vpow.pop %v1317
      %v1319 = vmul.f32 %v1298, 1.442695
      %v1320 = vpow.pop %v1319
      %v1321 = vmul.f32 %v1299, 1.442695
      %v1322 = vpow.pop %v1321
      %v1323 = vmul.f32 %v1300, 1.442695
      %v1324 = vpow.pop %v1323
      %v1325 = vmul.f32 %v1301, 1.442695
      %v1326 = vpow.pop %v1325
      %v1327 = vmul.f32 %v1302, 1.442695
      %v1328 = vpow.pop %v1327
      %v1329 = vmul.f32 %v1303, 1.442695
      %v1330 = vpow.pop %v1329
      %v1331 = vmul.f32 %v1304, 1.442695
      %v1332 = vpow.pop %v1331
      %v1333 = vmul.f32 %v1305, 1.442695
      %v1334 = vpow.pop %v1333
      %v1335 = vmul.f32 %v1306, 1.442695
      %v1336 = vpow.pop %v1335
      %v1337 = vmul.f32 %v1307, 1.442695
      %v1338 = vpow.pop %v1337
      %v1339 = vmul.f32 %v1308, 1.442695
      %v1340 = vpow.pop %v1339
      %vm1341 = vcmp.ne.s32.totalorder %v1095, %v1130
      %vm1342 = vcmp.ne.s32.totalorder %v1096, %v1130
      %vm1343 = vcmp.ne.s32.totalorder %v1097, %v1130
      %vm1344 = vcmp.ne.s32.totalorder %v1098, %v1130
      %vm1345 = vcmp.ne.s32.totalorder %v1099, %v1130
      %vm1346 = vcmp.ne.s32.totalorder %v1100, %v1130
      %vm1347 = vcmp.ne.s32.totalorder %v1101, %v1130
      %vm1348 = vcmp.ne.s32.totalorder %v1102, %v1130
      %vm1349 = vcmp.ne.s32.totalorder %v1103, %v1130
      %vm1350 = vcmp.ne.s32.totalorder %v1104, %v1130
      %vm1351 = vcmp.ne.s32.totalorder %v1105, %v1130
      %vm1352 = vcmp.ne.s32.totalorder %v1106, %v1130
      %vm1353 = vcmp.ne.s32.totalorder %v1107, %v1130
      %vm1354 = vcmp.ne.s32.totalorder %v1108, %v1130
      %vm1355 = vcmp.ne.s32.totalorder %v1109, %v1130
      %vm1356 = vcmp.ne.s32.totalorder %v1110, %v1130
      %vm1357 = vmand %vm1341, %vm1131
      %vm1358 = vmand %vm1342, %vm1131
      %vm1359 = vmand %vm1343, %vm1131
      %vm1360 = vmand %vm1344, %vm1131
      %vm1361 = vmand %vm1345, %vm1131
      %vm1362 = vmand %vm1346, %vm1131
      %vm1363 = vmand %vm1347, %vm1131
      %vm1364 = vmand %vm1348, %vm1131
      %vm1365 = vmand %vm1349, %vm1131
      %vm1366 = vmand %vm1350, %vm1131
      %vm1367 = vmand %vm1351, %vm1131
      %vm1368 = vmand %vm1352, %vm1131
      %vm1369 = vmand %vm1353, %vm1131
      %vm1370 = vmand %vm1354, %vm1131
      %vm1371 = vmand %vm1355, %vm1131
      %vm1372 = vmand %vm1356, %vm1131
      %v1373 = vsel %vm1357, %v1310, 0.0
      %v1374 = vsel %vm1358, %v1312, 0.0
      %v1375 = vsel %vm1359, %v1314, 0.0
      %v1376 = vsel %vm1360, %v1316, 0.0
      %v1377 = vsel %vm1361, %v1318, 0.0
      %v1378 = vsel %vm1362, %v1320, 0.0
      %v1379 = vsel %vm1363, %v1322, 0.0
      %v1380 = vsel %vm1364, %v1324, 0.0
      %v1381 = vsel %vm1365, %v1326, 0.0
      %v1382 = vsel %vm1366, %v1328, 0.0
      %v1383 = vsel %vm1367, %v1330, 0.0
      %v1384 = vsel %vm1368, %v1332, 0.0
      %v1385 = vsel %vm1369, %v1334, 0.0
      %v1386 = vsel %vm1370, %v1336, 0.0
      %v1387 = vsel %vm1371, %v1338, 0.0
      %v1388 = vsel %vm1372, %v1340, 0.0
      %vm1389 = vmand %vm1277, %vm1357
      %vm1390 = vmand %vm1278, %vm1358
      %vm1391 = vmand %vm1279, %vm1359
      %vm1392 = vmand %vm1280, %vm1360
      %vm1393 = vmand %vm1281, %vm1361
      %vm1394 = vmand %vm1282, %vm1362
      %vm1395 = vmand %vm1283, %vm1363
      %vm1396 = vmand %vm1284, %vm1364
      %vm1397 = vmand %vm1285, %vm1365
      %vm1398 = vmand %vm1286, %vm1366
      %vm1399 = vmand %vm1287, %vm1367
      %vm1400 = vmand %vm1288, %vm1368
      %vm1401 = vmand %vm1289, %vm1369
      %vm1402 = vmand %vm1290, %vm1370
      %vm1403 = vmand %vm1291, %vm1371
      %vm1404 = vmand %vm1292, %vm1372
      %v1405 = vsel %vm1389, 1.0, 0.0
      %v1406 = vsel %vm1390, 1.0, 0.0
      %v1407 = vsel %vm1391, 1.0, 0.0
      %v1408 = vsel %vm1392, 1.0, 0.0
      %v1409 = vsel %vm1393, 1.0, 0.0
      %v1410 = vsel %vm1394, 1.0, 0.0
      %v1411 = vsel %vm1395, 1.0, 0.0
      %v1412 = vsel %vm1396, 1.0, 0.0
      %v1413 = vsel %vm1397, 1.0, 0.0
      %v1414 = vsel %vm1398, 1.0, 0.0
      %v1415 = vsel %vm1399, 1.0, 0.0
      %v1416 = vsel %vm1400, 1.0, 0.0
      %v1417 = vsel %vm1401, 1.0, 0.0
      %v1418 = vsel %vm1402, 1.0, 0.0
      %v1419 = vsel %vm1403, 1.0, 0.0
      %v1420 = vsel %vm1404, 1.0, 0.0
      %v1421 = vadd.f32 %v1228, %v1373
      %v1422 = vadd.f32 %v1229, %v1374
      %v1423 = vadd.f32 %v1230, %v1375
      %v1424 = vadd.f32 %v1231, %v1376
      %v1425 = vadd.f32 %v1232, %v1377
      %v1426 = vadd.f32 %v1233, %v1378
      %v1427 = vadd.f32 %v1234, %v1379
      %v1428 = vadd.f32 %v1235, %v1380
      %v1429 = vadd.f32 %v1236, %v1381
      %v1430 = vadd.f32 %v1237, %v1382
      %v1431 = vadd.f32 %v1238, %v1383
      %v1432 = vadd.f32 %v1239, %v1384
      %v1433 = vadd.f32 %v1240, %v1385
      %v1434 = vadd.f32 %v1241, %v1386
      %v1435 = vadd.f32 %v1242, %v1387
      %v1436 = vadd.f32 %v1243, %v1388
      %v1437 = vmul.f32 %v1405, %v152
      %v1438 = vmul.f32 %v1406, %v155
      %v1439 = vmul.f32 %v1407, %v158
      %v1440 = vmul.f32 %v1408, %v161
      %v1441 = vmul.f32 %v1409, %v164
      %v1442 = vmul.f32 %v1410, %v167
      %v1443 = vmul.f32 %v1411, %v170
      %v1444 = vmul.f32 %v1412, %v173
      %v1445 = vmul.f32 %v1413, %v176
      %v1446 = vmul.f32 %v1414, %v179
      %v1447 = vmul.f32 %v1415, %v182
      %v1448 = vmul.f32 %v1416, %v185
      %v1449 = vmul.f32 %v1417, %v188
      %v1450 = vmul.f32 %v1418, %v191
      %v1451 = vmul.f32 %v1419, %v194
      %v1452 = vmul.f32 %v1420, %v197
      %v1453 = vadd.f32 %v1244, %v1437
      %v1454 = vadd.f32 %v1245, %v1438
      %v1455 = vadd.f32 %v1246, %v1439
      %v1456 = vadd.f32 %v1247, %v1440
      %v1457 = vadd.f32 %v1248, %v1441
      %v1458 = vadd.f32 %v1249, %v1442
      %v1459 = vadd.f32 %v1250, %v1443
      %v1460 = vadd.f32 %v1251, %v1444
      %v1461 = vadd.f32 %v1252, %v1445
      %v1462 = vadd.f32 %v1253, %v1446
      %v1463 = vadd.f32 %v1254, %v1447
      %v1464 = vadd.f32 %v1255, %v1448
      %v1465 = vadd.f32 %v1256, %v1449
      %v1466 = vadd.f32 %v1257, %v1450
      %v1467 = vadd.f32 %v1258, %v1451
      %v1468 = vadd.f32 %v1259, %v1452
      %v1469 = vadd.f32 %v1260, %v1405
      %v1470 = vadd.f32 %v1261, %v1406
      %v1471 = vadd.f32 %v1262, %v1407
      %v1472 = vadd.f32 %v1263, %v1408
      %v1473 = vadd.f32 %v1264, %v1409
      %v1474 = vadd.f32 %v1265, %v1410
      %v1475 = vadd.f32 %v1266, %v1411
      %v1476 = vadd.f32 %v1267, %v1412
      %v1477 = vadd.f32 %v1268, %v1413
      %v1478 = vadd.f32 %v1269, %v1414
      %v1479 = vadd.f32 %v1270, %v1415
      %v1480 = vadd.f32 %v1271, %v1416
      %v1481 = vadd.f32 %v1272, %v1417
      %v1482 = vadd.f32 %v1273, %v1418
      %v1483 = vadd.f32 %v1274, %v1419
      %v1484 = vadd.f32 %v1275, %v1420
      %1485 = vst [vmem:[#allocation2] sm:$0xff] %v1148
      %1486 = vst [vmem:[#allocation2 + $0x8] sm:$0xff] %v1149
      %1487 = vst [vmem:[#allocation2 + $0x10] sm:$0xff] %v1150
      %1488 = vst [vmem:[#allocation2 + $0x18] sm:$0xff] %v1151
      %1489 = vst [vmem:[#allocation2 + $0x20] sm:$0xff] %v1152
      %1490 = vst [vmem:[#allocation2 + $0x28] sm:$0xff] %v1153
      %1491 = vst [vmem:[#allocation2 + $0x30] sm:$0xff] %v1154
      %1492 = vst [vmem:[#allocation2 + $0x38] sm:$0xff] %v1155
      %1493 = vst [vmem:[#allocation2 + $0x40] sm:$0xff] %v1156
      %1494 = vst [vmem:[#allocation2 + $0x48] sm:$0xff] %v1157
      %1495 = vst [vmem:[#allocation2 + $0x50] sm:$0xff] %v1158
      %1496 = vst [vmem:[#allocation2 + $0x58] sm:$0xff] %v1159
      %1497 = vst [vmem:[#allocation2 + $0x60] sm:$0xff] %v1160
      %1498 = vst [vmem:[#allocation2 + $0x68] sm:$0xff] %v1161
      %1499 = vst [vmem:[#allocation2 + $0x70] sm:$0xff] %v1162
      %1500 = vst [vmem:[#allocation2 + $0x78] sm:$0xff] %v1163
      %1501 = vst [vmem:[#allocation3] sm:$0xff] %v1421
      %1502 = vst [vmem:[#allocation3 + $0x8] sm:$0xff] %v1422
      %1503 = vst [vmem:[#allocation3 + $0x10] sm:$0xff] %v1423
      %1504 = vst [vmem:[#allocation3 + $0x18] sm:$0xff] %v1424
      %1505 = vst [vmem:[#allocation3 + $0x20] sm:$0xff] %v1425
      %1506 = vst [vmem:[#allocation3 + $0x28] sm:$0xff] %v1426
      %1507 = vst [vmem:[#allocation3 + $0x30] sm:$0xff] %v1427
      %1508 = vst [vmem:[#allocation3 + $0x38] sm:$0xff] %v1428
      %1509 = vst [vmem:[#allocation3 + $0x40] sm:$0xff] %v1429
      %1510 = vst [vmem:[#allocation3 + $0x48] sm:$0xff] %v1430
      %1511 = vst [vmem:[#allocation3 + $0x50] sm:$0xff] %v1431
      %1512 = vst [vmem:[#allocation3 + $0x58] sm:$0xff] %v1432
      %1513 = vst [vmem:[#allocation3 + $0x60] sm:$0xff] %v1433
      %1514 = vst [vmem:[#allocation3 + $0x68] sm:$0xff] %v1434
      %1515 = vst [vmem:[#allocation3 + $0x70] sm:$0xff] %v1435
      %1516 = vst [vmem:[#allocation3 + $0x78] sm:$0xff] %v1436
      %1517 = vst [vmem:[#allocation4] sm:$0xff] %v1453
      %1518 = vst [vmem:[#allocation4 + $0x8] sm:$0xff] %v1454
      %1519 = vst [vmem:[#allocation4 + $0x10] sm:$0xff] %v1455
      %1520 = vst [vmem:[#allocation4 + $0x18] sm:$0xff] %v1456
      %1521 = vst [vmem:[#allocation4 + $0x20] sm:$0xff] %v1457
      %1522 = vst [vmem:[#allocation4 + $0x28] sm:$0xff] %v1458
      %1523 = vst [vmem:[#allocation4 + $0x30] sm:$0xff] %v1459
      %1524 = vst [vmem:[#allocation4 + $0x38] sm:$0xff] %v1460
      %1525 = vst [vmem:[#allocation4 + $0x40] sm:$0xff] %v1461
      %1526 = vst [vmem:[#allocation4 + $0x48] sm:$0xff] %v1462
      %1527 = vst [vmem:[#allocation4 + $0x50] sm:$0xff] %v1463
      %1528 = vst [vmem:[#allocation4 + $0x58] sm:$0xff] %v1464
      %1529 = vst [vmem:[#allocation4 + $0x60] sm:$0xff] %v1465
      %1530 = vst [vmem:[#allocation4 + $0x68] sm:$0xff] %v1466
      %1531 = vst [vmem:[#allocation4 + $0x70] sm:$0xff] %v1467
      %1532 = vst [vmem:[#allocation4 + $0x78] sm:$0xff] %v1468
      %1533 = vst [vmem:[#allocation5] sm:$0xff] %v1469
      %1534 = vst [vmem:[#allocation5 + $0x8] sm:$0xff] %v1470
      %1535 = vst [vmem:[#allocation5 + $0x10] sm:$0xff] %v1471
      %1536 = vst [vmem:[#allocation5 + $0x18] sm:$0xff] %v1472
      %1537 = vst [vmem:[#allocation5 + $0x20] sm:$0xff] %v1473
      %1538 = vst [vmem:[#allocation5 + $0x28] sm:$0xff] %v1474
      %1539 = vst [vmem:[#allocation5 + $0x30] sm:$0xff] %v1475
      %1540 = vst [vmem:[#allocation5 + $0x38] sm:$0xff] %v1476
      %1541 = vst [vmem:[#allocation5 + $0x40] sm:$0xff] %v1477
      %1542 = vst [vmem:[#allocation5 + $0x48] sm:$0xff] %v1478
      %1543 = vst [vmem:[#allocation5 + $0x50] sm:$0xff] %v1479
      %1544 = vst [vmem:[#allocation5 + $0x58] sm:$0xff] %v1480
      %1545 = vst [vmem:[#allocation5 + $0x60] sm:$0xff] %v1481
      %1546 = vst [vmem:[#allocation5 + $0x68] sm:$0xff] %v1482
      %1547 = vst [vmem:[#allocation5 + $0x70] sm:$0xff] %v1483
      %1548 = vst [vmem:[#allocation5 + $0x78] sm:$0xff] %v1484
      %v1549 = vld [vmem:[#allocation2] sm:$0xff]
      %v1550 = vld [vmem:[#allocation2 + $0x8] sm:$0xff]
      %v1551 = vld [vmem:[#allocation2 + $0x10] sm:$0xff]
      %v1552 = vld [vmem:[#allocation2 + $0x18] sm:$0xff]
      %v1553 = vld [vmem:[#allocation2 + $0x20] sm:$0xff]
      %v1554 = vld [vmem:[#allocation2 + $0x28] sm:$0xff]
      %v1555 = vld [vmem:[#allocation2 + $0x30] sm:$0xff]
      %v1556 = vld [vmem:[#allocation2 + $0x38] sm:$0xff]
      %v1557 = vld [vmem:[#allocation2 + $0x40] sm:$0xff]
      %v1558 = vld [vmem:[#allocation2 + $0x48] sm:$0xff]
      %v1559 = vld [vmem:[#allocation2 + $0x50] sm:$0xff]
      %v1560 = vld [vmem:[#allocation2 + $0x58] sm:$0xff]
      %v1561 = vld [vmem:[#allocation2 + $0x60] sm:$0xff]
      %v1562 = vld [vmem:[#allocation2 + $0x68] sm:$0xff]
      %v1563 = vld [vmem:[#allocation2 + $0x70] sm:$0xff]
      %v1564 = vld [vmem:[#allocation2 + $0x78] sm:$0xff]
      %1565 = vmax.xlane.f32.xlu0 %v1549
      %v1566 = vpop.xlane.xlu0 %1565
      %1567 = vmax.xlane.f32.xlu0 %v1550
      %v1568 = vpop.xlane.xlu0 %1567
      %1569 = vmax.xlane.f32.xlu0 %v1551
      %v1570 = vpop.xlane.xlu0 %1569
      %1571 = vmax.xlane.f32.xlu0 %v1552
      %v1572 = vpop.xlane.xlu0 %1571
      %1573 = vmax.xlane.f32.xlu0 %v1553
      %v1574 = vpop.xlane.xlu0 %1573
      %1575 = vmax.xlane.f32.xlu0 %v1554
      %v1576 = vpop.xlane.xlu0 %1575
      %1577 = vmax.xlane.f32.xlu0 %v1555
      %v1578 = vpop.xlane.xlu0 %1577
      %1579 = vmax.xlane.f32.xlu0 %v1556
      %v1580 = vpop.xlane.xlu0 %1579
      %1581 = vmax.xlane.f32.xlu0 %v1557
      %v1582 = vpop.xlane.xlu0 %1581
      %1583 = vmax.xlane.f32.xlu0 %v1558
      %v1584 = vpop.xlane.xlu0 %1583
      %1585 = vmax.xlane.f32.xlu0 %v1559
      %v1586 = vpop.xlane.xlu0 %1585
      %1587 = vmax.xlane.f32.xlu0 %v1560
      %v1588 = vpop.xlane.xlu0 %1587
      %1589 = vmax.xlane.f32.xlu0 %v1561
      %v1590 = vpop.xlane.xlu0 %1589
      %1591 = vmax.xlane.f32.xlu0 %v1562
      %v1592 = vpop.xlane.xlu0 %1591
      %1593 = vmax.xlane.f32.xlu0 %v1563
      %v1594 = vpop.xlane.xlu0 %1593
      %1595 = vmax.xlane.f32.xlu0 %v1564
      %v1596 = vpop.xlane.xlu0 %1595
      %v1597 = vld [vmem:[#allocation3] sm:$0xff]
      %v1598 = vld [vmem:[#allocation3 + $0x8] sm:$0xff]
      %v1599 = vld [vmem:[#allocation3 + $0x10] sm:$0xff]
      %v1600 = vld [vmem:[#allocation3 + $0x18] sm:$0xff]
      %v1601 = vld [vmem:[#allocation3 + $0x20] sm:$0xff]
      %v1602 = vld [vmem:[#allocation3 + $0x28] sm:$0xff]
      %v1603 = vld [vmem:[#allocation3 + $0x30] sm:$0xff]
      %v1604 = vld [vmem:[#allocation3 + $0x38] sm:$0xff]
      %v1605 = vld [vmem:[#allocation3 + $0x40] sm:$0xff]
      %v1606 = vld [vmem:[#allocation3 + $0x48] sm:$0xff]
      %v1607 = vld [vmem:[#allocation3 + $0x50] sm:$0xff]
      %v1608 = vld [vmem:[#allocation3 + $0x58] sm:$0xff]
      %v1609 = vld [vmem:[#allocation3 + $0x60] sm:$0xff]
      %v1610 = vld [vmem:[#allocation3 + $0x68] sm:$0xff]
      %v1611 = vld [vmem:[#allocation3 + $0x70] sm:$0xff]
      %v1612 = vld [vmem:[#allocation3 + $0x78] sm:$0xff]
      %v1613 = vsub.f32 %v1549, %v1566
      %v1614 = vsub.f32 %v1550, %v1568
      %v1615 = vsub.f32 %v1551, %v1570
      %v1616 = vsub.f32 %v1552, %v1572
      %v1617 = vsub.f32 %v1553, %v1574
      %v1618 = vsub.f32 %v1554, %v1576
      %v1619 = vsub.f32 %v1555, %v1578
      %v1620 = vsub.f32 %v1556, %v1580
      %v1621 = vsub.f32 %v1557, %v1582
      %v1622 = vsub.f32 %v1558, %v1584
      %v1623 = vsub.f32 %v1559, %v1586
      %v1624 = vsub.f32 %v1560, %v1588
      %v1625 = vsub.f32 %v1561, %v1590
      %v1626 = vsub.f32 %v1562, %v1592
      %v1627 = vsub.f32 %v1563, %v1594
      %v1628 = vsub.f32 %v1564, %v1596
      %v1629 = vmul.f32 %v1613, 1.442695
      %v1630 = vpow.pop %v1629
      %v1631 = vmul.f32 %v1614, 1.442695
      %v1632 = vpow.pop %v1631
      %v1633 = vmul.f32 %v1615, 1.442695
      %v1634 = vpow.pop %v1633
      %v1635 = vmul.f32 %v1616, 1.442695
      %v1636 = vpow.pop %v1635
      %v1637 = vmul.f32 %v1617, 1.442695
      %v1638 = vpow.pop %v1637
      %v1639 = vmul.f32 %v1618, 1.442695
      %v1640 = vpow.pop %v1639
      %v1641 = vmul.f32 %v1619, 1.442695
      %v1642 = vpow.pop %v1641
      %v1643 = vmul.f32 %v1620, 1.442695
      %v1644 = vpow.pop %v1643
      %v1645 = vmul.f32 %v1621, 1.442695
      %v1646 = vpow.pop %v1645
      %v1647 = vmul.f32 %v1622, 1.442695
      %v1648 = vpow.pop %v1647
      %v1649 = vmul.f32 %v1623, 1.442695
      %v1650 = vpow.pop %v1649
      %v1651 = vmul.f32 %v1624, 1.442695
      %v1652 = vpow.pop %v1651
      %v1653 = vmul.f32 %v1625, 1.442695
      %v1654 = vpow.pop %v1653
      %v1655 = vmul.f32 %v1626, 1.442695
      %v1656 = vpow.pop %v1655
      %v1657 = vmul.f32 %v1627, 1.442695
      %v1658 = vpow.pop %v1657
      %v1659 = vmul.f32 %v1628, 1.442695
      %v1660 = vpow.pop %v1659
      %v1661 = vmul.f32 %v1597, %v1630
      %v1662 = vmul.f32 %v1598, %v1632
      %v1663 = vmul.f32 %v1599, %v1634
      %v1664 = vmul.f32 %v1600, %v1636
      %v1665 = vmul.f32 %v1601, %v1638
      %v1666 = vmul.f32 %v1602, %v1640
      %v1667 = vmul.f32 %v1603, %v1642
      %v1668 = vmul.f32 %v1604, %v1644
      %v1669 = vmul.f32 %v1605, %v1646
      %v1670 = vmul.f32 %v1606, %v1648
      %v1671 = vmul.f32 %v1607, %v1650
      %v1672 = vmul.f32 %v1608, %v1652
      %v1673 = vmul.f32 %v1609, %v1654
      %v1674 = vmul.f32 %v1610, %v1656
      %v1675 = vmul.f32 %v1611, %v1658
      %v1676 = vmul.f32 %v1612, %v1660
      %1677 = vadd.xlane.f32.xlu0 %v1661
      %v1678 = vpop.xlane.xlu0 %1677
      %1679 = vadd.xlane.f32.xlu0 %v1662
      %v1680 = vpop.xlane.xlu0 %1679
      %1681 = vadd.xlane.f32.xlu0 %v1663
      %v1682 = vpop.xlane.xlu0 %1681
      %1683 = vadd.xlane.f32.xlu0 %v1664
      %v1684 = vpop.xlane.xlu0 %1683
      %1685 = vadd.xlane.f32.xlu0 %v1665
      %v1686 = vpop.xlane.xlu0 %1685
      %1687 = vadd.xlane.f32.xlu0 %v1666
      %v1688 = vpop.xlane.xlu0 %1687
      %1689 = vadd.xlane.f32.xlu0 %v1667
      %v1690 = vpop.xlane.xlu0 %1689
      %1691 = vadd.xlane.f32.xlu0 %v1668
      %v1692 = vpop.xlane.xlu0 %1691
      %1693 = vadd.xlane.f32.xlu0 %v1669
      %v1694 = vpop.xlane.xlu0 %1693
      %1695 = vadd.xlane.f32.xlu0 %v1670
      %v1696 = vpop.xlane.xlu0 %1695
      %1697 = vadd.xlane.f32.xlu0 %v1671
      %v1698 = vpop.xlane.xlu0 %1697
      %1699 = vadd.xlane.f32.xlu0 %v1672
      %v1700 = vpop.xlane.xlu0 %1699
      %1701 = vadd.xlane.f32.xlu0 %v1673
      %v1702 = vpop.xlane.xlu0 %1701
      %1703 = vadd.xlane.f32.xlu0 %v1674
      %v1704 = vpop.xlane.xlu0 %1703
      %1705 = vadd.xlane.f32.xlu0 %v1675
      %v1706 = vpop.xlane.xlu0 %1705
      %1707 = vadd.xlane.f32.xlu0 %v1676
      %v1708 = vpop.xlane.xlu0 %1707
      %v1709 = vld [vmem:[#allocation4] sm:$0xff]
      %v1710 = vld [vmem:[#allocation4 + $0x8] sm:$0xff]
      %v1711 = vld [vmem:[#allocation4 + $0x10] sm:$0xff]
      %v1712 = vld [vmem:[#allocation4 + $0x18] sm:$0xff]
      %v1713 = vld [vmem:[#allocation4 + $0x20] sm:$0xff]
      %v1714 = vld [vmem:[#allocation4 + $0x28] sm:$0xff]
      %v1715 = vld [vmem:[#allocation4 + $0x30] sm:$0xff]
      %v1716 = vld [vmem:[#allocation4 + $0x38] sm:$0xff]
      %v1717 = vld [vmem:[#allocation4 + $0x40] sm:$0xff]
      %v1718 = vld [vmem:[#allocation4 + $0x48] sm:$0xff]
      %v1719 = vld [vmem:[#allocation4 + $0x50] sm:$0xff]
      %v1720 = vld [vmem:[#allocation4 + $0x58] sm:$0xff]
      %v1721 = vld [vmem:[#allocation4 + $0x60] sm:$0xff]
      %v1722 = vld [vmem:[#allocation4 + $0x68] sm:$0xff]
      %v1723 = vld [vmem:[#allocation4 + $0x70] sm:$0xff]
      %v1724 = vld [vmem:[#allocation4 + $0x78] sm:$0xff]
      %1725 = vadd.xlane.f32.xlu0 %v1709
      %v1726 = vpop.xlane.xlu0 %1725
      %1727 = vadd.xlane.f32.xlu0 %v1710
      %v1728 = vpop.xlane.xlu0 %1727
      %1729 = vadd.xlane.f32.xlu0 %v1711
      %v1730 = vpop.xlane.xlu0 %1729
      %1731 = vadd.xlane.f32.xlu0 %v1712
      %v1732 = vpop.xlane.xlu0 %1731
      %1733 = vadd.xlane.f32.xlu0 %v1713
      %v1734 = vpop.xlane.xlu0 %1733
      %1735 = vadd.xlane.f32.xlu0 %v1714
      %v1736 = vpop.xlane.xlu0 %1735
      %1737 = vadd.xlane.f32.xlu0 %v1715
      %v1738 = vpop.xlane.xlu0 %1737
      %1739 = vadd.xlane.f32.xlu0 %v1716
      %v1740 = vpop.xlane.xlu0 %1739
      %1741 = vadd.xlane.f32.xlu0 %v1717
      %v1742 = vpop.xlane.xlu0 %1741
      %1743 = vadd.xlane.f32.xlu0 %v1718
      %v1744 = vpop.xlane.xlu0 %1743
      %1745 = vadd.xlane.f32.xlu0 %v1719
      %v1746 = vpop.xlane.xlu0 %1745
      %1747 = vadd.xlane.f32.xlu0 %v1720
      %v1748 = vpop.xlane.xlu0 %1747
      %1749 = vadd.xlane.f32.xlu0 %v1721
      %v1750 = vpop.xlane.xlu0 %1749
      %1751 = vadd.xlane.f32.xlu0 %v1722
      %v1752 = vpop.xlane.xlu0 %1751
      %1753 = vadd.xlane.f32.xlu0 %v1723
      %v1754 = vpop.xlane.xlu0 %1753
      %1755 = vadd.xlane.f32.xlu0 %v1724
      %v1756 = vpop.xlane.xlu0 %1755
      %v1757 = vld [vmem:[#allocation5] sm:$0xff]
      %v1758 = vld [vmem:[#allocation5 + $0x8] sm:$0xff]
      %v1759 = vld [vmem:[#allocation5 + $0x10] sm:$0xff]
      %v1760 = vld [vmem:[#allocation5 + $0x18] sm:$0xff]
      %v1761 = vld [vmem:[#allocation5 + $0x20] sm:$0xff]
      %v1762 = vld [vmem:[#allocation5 + $0x28] sm:$0xff]
      %v1763 = vld [vmem:[#allocation5 + $0x30] sm:$0xff]
      %v1764 = vld [vmem:[#allocation5 + $0x38] sm:$0xff]
      %v1765 = vld [vmem:[#allocation5 + $0x40] sm:$0xff]
      %v1766 = vld [vmem:[#allocation5 + $0x48] sm:$0xff]
      %v1767 = vld [vmem:[#allocation5 + $0x50] sm:$0xff]
      %v1768 = vld [vmem:[#allocation5 + $0x58] sm:$0xff]
      %v1769 = vld [vmem:[#allocation5 + $0x60] sm:$0xff]
      %v1770 = vld [vmem:[#allocation5 + $0x68] sm:$0xff]
      %v1771 = vld [vmem:[#allocation5 + $0x70] sm:$0xff]
      %v1772 = vld [vmem:[#allocation5 + $0x78] sm:$0xff]
      %1773 = vadd.xlane.f32.xlu0 %v1757
      %v1774 = vpop.xlane.xlu0 %1773
      %1775 = vadd.xlane.f32.xlu0 %v1758
      %v1776 = vpop.xlane.xlu0 %1775
      %1777 = vadd.xlane.f32.xlu0 %v1759
      %v1778 = vpop.xlane.xlu0 %1777
      %1779 = vadd.xlane.f32.xlu0 %v1760
      %v1780 = vpop.xlane.xlu0 %1779
      %1781 = vadd.xlane.f32.xlu0 %v1761
      %v1782 = vpop.xlane.xlu0 %1781
      %1783 = vadd.xlane.f32.xlu0 %v1762
      %v1784 = vpop.xlane.xlu0 %1783
      %1785 = vadd.xlane.f32.xlu0 %v1763
      %v1786 = vpop.xlane.xlu0 %1785
      %1787 = vadd.xlane.f32.xlu0 %v1764
      %v1788 = vpop.xlane.xlu0 %1787
      %1789 = vadd.xlane.f32.xlu0 %v1765
      %v1790 = vpop.xlane.xlu0 %1789
      %1791 = vadd.xlane.f32.xlu0 %v1766
      %v1792 = vpop.xlane.xlu0 %1791
      %1793 = vadd.xlane.f32.xlu0 %v1767
      %v1794 = vpop.xlane.xlu0 %1793
      %1795 = vadd.xlane.f32.xlu0 %v1768
      %v1796 = vpop.xlane.xlu0 %1795
      %1797 = vadd.xlane.f32.xlu0 %v1769
      %v1798 = vpop.xlane.xlu0 %1797
      %1799 = vadd.xlane.f32.xlu0 %v1770
      %v1800 = vpop.xlane.xlu0 %1799
      %1801 = vadd.xlane.f32.xlu0 %v1771
      %v1802 = vpop.xlane.xlu0 %1801
      %1803 = vadd.xlane.f32.xlu0 %v1772
      %v1804 = vpop.xlane.xlu0 %1803
      %vm1805 = vcmp.lt.f32.partialorder %v1774, 1e-06
      %vm1806 = vcmp.lt.f32.partialorder %v1776, 1e-06
      %vm1807 = vcmp.lt.f32.partialorder %v1778, 1e-06
      %vm1808 = vcmp.lt.f32.partialorder %v1780, 1e-06
      %vm1809 = vcmp.lt.f32.partialorder %v1782, 1e-06
      %vm1810 = vcmp.lt.f32.partialorder %v1784, 1e-06
      %vm1811 = vcmp.lt.f32.partialorder %v1786, 1e-06
      %vm1812 = vcmp.lt.f32.partialorder %v1788, 1e-06
      %vm1813 = vcmp.lt.f32.partialorder %v1790, 1e-06
      %vm1814 = vcmp.lt.f32.partialorder %v1792, 1e-06
      %vm1815 = vcmp.lt.f32.partialorder %v1794, 1e-06
      %vm1816 = vcmp.lt.f32.partialorder %v1796, 1e-06
      %vm1817 = vcmp.lt.f32.partialorder %v1798, 1e-06
      %vm1818 = vcmp.lt.f32.partialorder %v1800, 1e-06
      %vm1819 = vcmp.lt.f32.partialorder %v1802, 1e-06
      %vm1820 = vcmp.lt.f32.partialorder %v1804, 1e-06
      %v1821 = vsel %vm1805, 1.0, %v1774
      %v1822 = vsel %vm1806, 1.0, %v1776
      %v1823 = vsel %vm1807, 1.0, %v1778
      %v1824 = vsel %vm1808, 1.0, %v1780
      %v1825 = vsel %vm1809, 1.0, %v1782
      %v1826 = vsel %vm1810, 1.0, %v1784
      %v1827 = vsel %vm1811, 1.0, %v1786
      %v1828 = vsel %vm1812, 1.0, %v1788
      %v1829 = vsel %vm1813, 1.0, %v1790
      %v1830 = vsel %vm1814, 1.0, %v1792
      %v1831 = vsel %vm1815, 1.0, %v1794
      %v1832 = vsel %vm1816, 1.0, %v1796
      %v1833 = vsel %vm1817, 1.0, %v1798
      %v1834 = vsel %vm1818, 1.0, %v1800
      %v1835 = vsel %vm1819, 1.0, %v1802
      %v1836 = vsel %vm1820, 1.0, %v1804
      %v1837 = vmul.f32 %v1774, %v1566
      %v1838 = vmul.f32 %v1776, %v1568
      %v1839 = vmul.f32 %v1778, %v1570
      %v1840 = vmul.f32 %v1780, %v1572
      %v1841 = vmul.f32 %v1782, %v1574
      %v1842 = vmul.f32 %v1784, %v1576
      %v1843 = vmul.f32 %v1786, %v1578
      %v1844 = vmul.f32 %v1788, %v1580
      %v1845 = vmul.f32 %v1790, %v1582
      %v1846 = vmul.f32 %v1792, %v1584
      %v1847 = vmul.f32 %v1794, %v1586
      %v1848 = vmul.f32 %v1796, %v1588
      %v1849 = vmul.f32 %v1798, %v1590
      %v1850 = vmul.f32 %v1800, %v1592
      %v1851 = vmul.f32 %v1802, %v1594
      %v1852 = vmul.f32 %v1804, %v1596
      %v1853 = vsub.f32 %v1726, %v1837
      %v1854 = vsub.f32 %v1728, %v1838
      %v1855 = vsub.f32 %v1730, %v1839
      %v1856 = vsub.f32 %v1732, %v1840
      %v1857 = vsub.f32 %v1734, %v1841
      %v1858 = vsub.f32 %v1736, %v1842
      %v1859 = vsub.f32 %v1738, %v1843
      %v1860 = vsub.f32 %v1740, %v1844
      %v1861 = vsub.f32 %v1742, %v1845
      %v1862 = vsub.f32 %v1744, %v1846
      %v1863 = vsub.f32 %v1746, %v1847
      %v1864 = vsub.f32 %v1748, %v1848
      %v1865 = vsub.f32 %v1750, %v1849
      %v1866 = vsub.f32 %v1752, %v1850
      %v1867 = vsub.f32 %v1754, %v1851
      %v1868 = vsub.f32 %v1756, %v1852
      %v1869 = vadd.f32 %v1678, 1e-06
      %v1870 = vadd.f32 %v1680, 1e-06
      %v1871 = vadd.f32 %v1682, 1e-06
      %v1872 = vadd.f32 %v1684, 1e-06
      %v1873 = vadd.f32 %v1686, 1e-06
      %v1874 = vadd.f32 %v1688, 1e-06
      %v1875 = vadd.f32 %v1690, 1e-06
      %v1876 = vadd.f32 %v1692, 1e-06
      %v1877 = vadd.f32 %v1694, 1e-06
      %v1878 = vadd.f32 %v1696, 1e-06
      %v1879 = vadd.f32 %v1698, 1e-06
      %v1880 = vadd.f32 %v1700, 1e-06
      %v1881 = vadd.f32 %v1702, 1e-06
      %v1882 = vadd.f32 %v1704, 1e-06
      %v1883 = vadd.f32 %v1706, 1e-06
      %v1884 = vadd.f32 %v1708, 1e-06
      %v1885 = vlog2.pop %v1869
      %v1886 = vmul.f32 %v1885, 0.6931472
      %v1887 = vlog2.pop %v1870
      %v1888 = vmul.f32 %v1887, 0.6931472
      %v1889 = vlog2.pop %v1871
      %v1890 = vmul.f32 %v1889, 0.6931472
      %v1891 = vlog2.pop %v1872
      %v1892 = vmul.f32 %v1891, 0.6931472
      %v1893 = vlog2.pop %v1873
      %v1894 = vmul.f32 %v1893, 0.6931472
      %v1895 = vlog2.pop %v1874
      %v1896 = vmul.f32 %v1895, 0.6931472
      %v1897 = vlog2.pop %v1875
      %v1898 = vmul.f32 %v1897, 0.6931472
      %v1899 = vlog2.pop %v1876
      %v1900 = vmul.f32 %v1899, 0.6931472
      %v1901 = vlog2.pop %v1877
      %v1902 = vmul.f32 %v1901, 0.6931472
      %v1903 = vlog2.pop %v1878
      %v1904 = vmul.f32 %v1903, 0.6931472
      %v1905 = vlog2.pop %v1879
      %v1906 = vmul.f32 %v1905, 0.6931472
      %v1907 = vlog2.pop %v1880
      %v1908 = vmul.f32 %v1907, 0.6931472
      %v1909 = vlog2.pop %v1881
      %v1910 = vmul.f32 %v1909, 0.6931472
      %v1911 = vlog2.pop %v1882
      %v1912 = vmul.f32 %v1911, 0.6931472
      %v1913 = vlog2.pop %v1883
      %v1914 = vmul.f32 %v1913, 0.6931472
      %v1915 = vlog2.pop %v1884
      %v1916 = vmul.f32 %v1915, 0.6931472
      %v1917 = vmul.f32 %v1774, %v1886
      %v1918 = vmul.f32 %v1776, %v1888
      %v1919 = vmul.f32 %v1778, %v1890
      %v1920 = vmul.f32 %v1780, %v1892
      %v1921 = vmul.f32 %v1782, %v1894
      %v1922 = vmul.f32 %v1784, %v1896
      %v1923 = vmul.f32 %v1786, %v1898
      %v1924 = vmul.f32 %v1788, %v1900
      %v1925 = vmul.f32 %v1790, %v1902
      %v1926 = vmul.f32 %v1792, %v1904
      %v1927 = vmul.f32 %v1794, %v1906
      %v1928 = vmul.f32 %v1796, %v1908
      %v1929 = vmul.f32 %v1798, %v1910
      %v1930 = vmul.f32 %v1800, %v1912
      %v1931 = vmul.f32 %v1802, %v1914
      %v1932 = vmul.f32 %v1804, %v1916
      %v1933 = vsub.f32 %v1853, %v1917
      %v1934 = vsub.f32 %v1854, %v1918
      %v1935 = vsub.f32 %v1855, %v1919
      %v1936 = vsub.f32 %v1856, %v1920
      %v1937 = vsub.f32 %v1857, %v1921
      %v1938 = vsub.f32 %v1858, %v1922
      %v1939 = vsub.f32 %v1859, %v1923
      %v1940 = vsub.f32 %v1860, %v1924
      %v1941 = vsub.f32 %v1861, %v1925
      %v1942 = vsub.f32 %v1862, %v1926
      %v1943 = vsub.f32 %v1863, %v1927
      %v1944 = vsub.f32 %v1864, %v1928
      %v1945 = vsub.f32 %v1865, %v1929
      %v1946 = vsub.f32 %v1866, %v1930
      %v1947 = vsub.f32 %v1867, %v1931
      %v1948 = vsub.f32 %v1868, %v1932
      %v1949 = vrcp.pop %v1821
      %v1950 = vmul.f32 %v1821, %v1949
      %v1951 = vsub.f32 1.0, %v1950
      %v1952 = vmul.f32 %v1949, %v1951
      %v1953 = vadd.f32 %v1949, %v1952
      %vm1954 = vweird.f32 %v1821
      %vm1955 = vweird.f32 %v1949
      %vm1956 = vmor %vm1954, %vm1955
      %v1957 = vsel %vm1956, %v1949, %v1953
      %v1958 = vand.u32 2147483647, %v1821
      %vm1959 = vcmp.eq.f32.partialorder %v1958, 8.507059e+37
      %v1960 = vand.u32 %v1821, 2147483648
      %v1961 = vor.u32 1.1754944e-38, %v1960
      %v1962 = vsel %vm1959, %v1961, %v1957
      %v1963 = vmul.f32 %v1933, %v1962
      %v1964 = vrcp.pop %v1822
      %v1965 = vmul.f32 %v1822, %v1964
      %v1966 = vsub.f32 1.0, %v1965
      %v1967 = vmul.f32 %v1964, %v1966
      %v1968 = vadd.f32 %v1964, %v1967
      %vm1969 = vweird.f32 %v1822
      %vm1970 = vweird.f32 %v1964
      %vm1971 = vmor %vm1969, %vm1970
      %v1972 = vsel %vm1971, %v1964, %v1968
      %v1973 = vand.u32 2147483647, %v1822
      %vm1974 = vcmp.eq.f32.partialorder %v1973, 8.507059e+37
      %v1975 = vand.u32 %v1822, 2147483648
      %v1976 = vor.u32 1.1754944e-38, %v1975
      %v1977 = vsel %vm1974, %v1976, %v1972
      %v1978 = vmul.f32 %v1934, %v1977
      %v1979 = vrcp.pop %v1823
      %v1980 = vmul.f32 %v1823, %v1979
      %v1981 = vsub.f32 1.0, %v1980
      %v1982 = vmul.f32 %v1979, %v1981
      %v1983 = vadd.f32 %v1979, %v1982
      %vm1984 = vweird.f32 %v1823
      %vm1985 = vweird.f32 %v1979
      %vm1986 = vmor %vm1984, %vm1985
      %v1987 = vsel %vm1986, %v1979, %v1983
      %v1988 = vand.u32 2147483647, %v1823
      %vm1989 = vcmp.eq.f32.partialorder %v1988, 8.507059e+37
      %v1990 = vand.u32 %v1823, 2147483648
      %v1991 = vor.u32 1.1754944e-38, %v1990
      %v1992 = vsel %vm1989, %v1991, %v1987
      %v1993 = vmul.f32 %v1935, %v1992
      %v1994 = vrcp.pop %v1824
      %v1995 = vmul.f32 %v1824, %v1994
      %v1996 = vsub.f32 1.0, %v1995
      %v1997 = vmul.f32 %v1994, %v1996
      %v1998 = vadd.f32 %v1994, %v1997
      %vm1999 = vweird.f32 %v1824
      %vm2000 = vweird.f32 %v1994
      %vm2001 = vmor %vm1999, %vm2000
      %v2002 = vsel %vm2001, %v1994, %v1998
      %v2003 = vand.u32 2147483647, %v1824
      %vm2004 = vcmp.eq.f32.partialorder %v2003, 8.507059e+37
      %v2005 = vand.u32 %v1824, 2147483648
      %v2006 = vor.u32 1.1754944e-38, %v2005
      %v2007 = vsel %vm2004, %v2006, %v2002
      %v2008 = vmul.f32 %v1936, %v2007
      %v2009 = vrcp.pop %v1825
      %v2010 = vmul.f32 %v1825, %v2009
      %v2011 = vsub.f32 1.0, %v2010
      %v2012 = vmul.f32 %v2009, %v2011
      %v2013 = vadd.f32 %v2009, %v2012
      %vm2014 = vweird.f32 %v1825
      %vm2015 = vweird.f32 %v2009
      %vm2016 = vmor %vm2014, %vm2015
      %v2017 = vsel %vm2016, %v2009, %v2013
      %v2018 = vand.u32 2147483647, %v1825
      %vm2019 = vcmp.eq.f32.partialorder %v2018, 8.507059e+37
      %v2020 = vand.u32 %v1825, 2147483648
      %v2021 = vor.u32 1.1754944e-38, %v2020
      %v2022 = vsel %vm2019, %v2021, %v2017
      %v2023 = vmul.f32 %v1937, %v2022
      %v2024 = vrcp.pop %v1826
      %v2025 = vmul.f32 %v1826, %v2024
      %v2026 = vsub.f32 1.0, %v2025
      %v2027 = vmul.f32 %v2024, %v2026
      %v2028 = vadd.f32 %v2024, %v2027
      %vm2029 = vweird.f32 %v1826
      %vm2030 = vweird.f32 %v2024
      %vm2031 = vmor %vm2029, %vm2030
      %v2032 = vsel %vm2031, %v2024, %v2028
      %v2033 = vand.u32 2147483647, %v1826
      %vm2034 = vcmp.eq.f32.partialorder %v2033, 8.507059e+37
      %v2035 = vand.u32 %v1826, 2147483648
      %v2036 = vor.u32 1.1754944e-38, %v2035
      %v2037 = vsel %vm2034, %v2036, %v2032
      %v2038 = vmul.f32 %v1938, %v2037
      %v2039 = vrcp.pop %v1827
      %v2040 = vmul.f32 %v1827, %v2039
      %v2041 = vsub.f32 1.0, %v2040
      %v2042 = vmul.f32 %v2039, %v2041
      %v2043 = vadd.f32 %v2039, %v2042
      %vm2044 = vweird.f32 %v1827
      %vm2045 = vweird.f32 %v2039
      %vm2046 = vmor %vm2044, %vm2045
      %v2047 = vsel %vm2046, %v2039, %v2043
      %v2048 = vand.u32 2147483647, %v1827
      %vm2049 = vcmp.eq.f32.partialorder %v2048, 8.507059e+37
      %v2050 = vand.u32 %v1827, 2147483648
      %v2051 = vor.u32 1.1754944e-38, %v2050
      %v2052 = vsel %vm2049, %v2051, %v2047
      %v2053 = vmul.f32 %v1939, %v2052
      %v2054 = vrcp.pop %v1828
      %v2055 = vmul.f32 %v1828, %v2054
      %v2056 = vsub.f32 1.0, %v2055
      %v2057 = vmul.f32 %v2054, %v2056
      %v2058 = vadd.f32 %v2054, %v2057
      %vm2059 = vweird.f32 %v1828
      %vm2060 = vweird.f32 %v2054
      %vm2061 = vmor %vm2059, %vm2060
      %v2062 = vsel %vm2061, %v2054, %v2058
      %v2063 = vand.u32 2147483647, %v1828
      %vm2064 = vcmp.eq.f32.partialorder %v2063, 8.507059e+37
      %v2065 = vand.u32 %v1828, 2147483648
      %v2066 = vor.u32 1.1754944e-38, %v2065
      %v2067 = vsel %vm2064, %v2066, %v2062
      %v2068 = vmul.f32 %v1940, %v2067
      %v2069 = vrcp.pop %v1829
      %v2070 = vmul.f32 %v1829, %v2069
      %v2071 = vsub.f32 1.0, %v2070
      %v2072 = vmul.f32 %v2069, %v2071
      %v2073 = vadd.f32 %v2069, %v2072
      %vm2074 = vweird.f32 %v1829
      %vm2075 = vweird.f32 %v2069
      %vm2076 = vmor %vm2074, %vm2075
      %v2077 = vsel %vm2076, %v2069, %v2073
      %v2078 = vand.u32 2147483647, %v1829
      %vm2079 = vcmp.eq.f32.partialorder %v2078, 8.507059e+37
      %v2080 = vand.u32 %v1829, 2147483648
      %v2081 = vor.u32 1.1754944e-38, %v2080
      %v2082 = vsel %vm2079, %v2081, %v2077
      %v2083 = vmul.f32 %v1941, %v2082
      %v2084 = vrcp.pop %v1830
      %v2085 = vmul.f32 %v1830, %v2084
      %v2086 = vsub.f32 1.0, %v2085
      %v2087 = vmul.f32 %v2084, %v2086
      %v2088 = vadd.f32 %v2084, %v2087
      %vm2089 = vweird.f32 %v1830
      %vm2090 = vweird.f32 %v2084
      %vm2091 = vmor %vm2089, %vm2090
      %v2092 = vsel %vm2091, %v2084, %v2088
      %v2093 = vand.u32 2147483647, %v1830
      %vm2094 = vcmp.eq.f32.partialorder %v2093, 8.507059e+37
      %v2095 = vand.u32 %v1830, 2147483648
      %v2096 = vor.u32 1.1754944e-38, %v2095
      %v2097 = vsel %vm2094, %v2096, %v2092
      %v2098 = vmul.f32 %v1942, %v2097
      %v2099 = vrcp.pop %v1831
      %v2100 = vmul.f32 %v1831, %v2099
      %v2101 = vsub.f32 1.0, %v2100
      %v2102 = vmul.f32 %v2099, %v2101
      %v2103 = vadd.f32 %v2099, %v2102
      %vm2104 = vweird.f32 %v1831
      %vm2105 = vweird.f32 %v2099
      %vm2106 = vmor %vm2104, %vm2105
      %v2107 = vsel %vm2106, %v2099, %v2103
      %v2108 = vand.u32 2147483647, %v1831
      %vm2109 = vcmp.eq.f32.partialorder %v2108, 8.507059e+37
      %v2110 = vand.u32 %v1831, 2147483648
      %v2111 = vor.u32 1.1754944e-38, %v2110
      %v2112 = vsel %vm2109, %v2111, %v2107
      %v2113 = vmul.f32 %v1943, %v2112
      %v2114 = vrcp.pop %v1832
      %v2115 = vmul.f32 %v1832, %v2114
      %v2116 = vsub.f32 1.0, %v2115
      %v2117 = vmul.f32 %v2114, %v2116
      %v2118 = vadd.f32 %v2114, %v2117
      %vm2119 = vweird.f32 %v1832
      %vm2120 = vweird.f32 %v2114
      %vm2121 = vmor %vm2119, %vm2120
      %v2122 = vsel %vm2121, %v2114, %v2118
      %v2123 = vand.u32 2147483647, %v1832
      %vm2124 = vcmp.eq.f32.partialorder %v2123, 8.507059e+37
      %v2125 = vand.u32 %v1832, 2147483648
      %v2126 = vor.u32 1.1754944e-38, %v2125
      %v2127 = vsel %vm2124, %v2126, %v2122
      %v2128 = vmul.f32 %v1944, %v2127
      %v2129 = vrcp.pop %v1833
      %v2130 = vmul.f32 %v1833, %v2129
      %v2131 = vsub.f32 1.0, %v2130
      %v2132 = vmul.f32 %v2129, %v2131
      %v2133 = vadd.f32 %v2129, %v2132
      %vm2134 = vweird.f32 %v1833
      %vm2135 = vweird.f32 %v2129
      %vm2136 = vmor %vm2134, %vm2135
      %v2137 = vsel %vm2136, %v2129, %v2133
      %v2138 = vand.u32 2147483647, %v1833
      %vm2139 = vcmp.eq.f32.partialorder %v2138, 8.507059e+37
      %v2140 = vand.u32 %v1833, 2147483648
      %v2141 = vor.u32 1.1754944e-38, %v2140
      %v2142 = vsel %vm2139, %v2141, %v2137
      %v2143 = vmul.f32 %v1945, %v2142
      %v2144 = vrcp.pop %v1834
      %v2145 = vmul.f32 %v1834, %v2144
      %v2146 = vsub.f32 1.0, %v2145
      %v2147 = vmul.f32 %v2144, %v2146
      %v2148 = vadd.f32 %v2144, %v2147
      %vm2149 = vweird.f32 %v1834
      %vm2150 = vweird.f32 %v2144
      %vm2151 = vmor %vm2149, %vm2150
      %v2152 = vsel %vm2151, %v2144, %v2148
      %v2153 = vand.u32 2147483647, %v1834
      %vm2154 = vcmp.eq.f32.partialorder %v2153, 8.507059e+37
      %v2155 = vand.u32 %v1834, 2147483648
      %v2156 = vor.u32 1.1754944e-38, %v2155
      %v2157 = vsel %vm2154, %v2156, %v2152
      %v2158 = vmul.f32 %v1946, %v2157
      %v2159 = vrcp.pop %v1835
      %v2160 = vmul.f32 %v1835, %v2159
      %v2161 = vsub.f32 1.0, %v2160
      %v2162 = vmul.f32 %v2159, %v2161
      %v2163 = vadd.f32 %v2159, %v2162
      %vm2164 = vweird.f32 %v1835
      %vm2165 = vweird.f32 %v2159
      %vm2166 = vmor %vm2164, %vm2165
      %v2167 = vsel %vm2166, %v2159, %v2163
      %v2168 = vand.u32 2147483647, %v1835
      %vm2169 = vcmp.eq.f32.partialorder %v2168, 8.507059e+37
      %v2170 = vand.u32 %v1835, 2147483648
      %v2171 = vor.u32 1.1754944e-38, %v2170
      %v2172 = vsel %vm2169, %v2171, %v2167
      %v2173 = vmul.f32 %v1947, %v2172
      %v2174 = vrcp.pop %v1836
      %v2175 = vmul.f32 %v1836, %v2174
      %v2176 = vsub.f32 1.0, %v2175
      %v2177 = vmul.f32 %v2174, %v2176
      %v2178 = vadd.f32 %v2174, %v2177
      %vm2179 = vweird.f32 %v1836
      %vm2180 = vweird.f32 %v2174
      %vm2181 = vmor %vm2179, %vm2180
      %v2182 = vsel %vm2181, %v2174, %v2178
      %v2183 = vand.u32 2147483647, %v1836
      %vm2184 = vcmp.eq.f32.partialorder %v2183, 8.507059e+37
      %v2185 = vand.u32 %v1836, 2147483648
      %v2186 = vor.u32 1.1754944e-38, %v2185
      %v2187 = vsel %vm2184, %v2186, %v2182
      %v2188 = vmul.f32 %v1948, %v2187
      %v2189 = vmul.f32 %v1963, -1.0
      %v2190 = vmul.f32 %v1978, -1.0
      %v2191 = vmul.f32 %v1993, -1.0
      %v2192 = vmul.f32 %v2008, -1.0
      %v2193 = vmul.f32 %v2023, -1.0
      %v2194 = vmul.f32 %v2038, -1.0
      %v2195 = vmul.f32 %v2053, -1.0
      %v2196 = vmul.f32 %v2068, -1.0
      %v2197 = vmul.f32 %v2083, -1.0
      %v2198 = vmul.f32 %v2098, -1.0
      %v2199 = vmul.f32 %v2113, -1.0
      %v2200 = vmul.f32 %v2128, -1.0
      %v2201 = vmul.f32 %v2143, -1.0
      %v2202 = vmul.f32 %v2158, -1.0
      %v2203 = vmul.f32 %v2173, -1.0
      %v2204 = vmul.f32 %v2188, -1.0
      %2205 = vst [vmem:[#allocation9] sm:$0xff] %v2189
      %2206 = vst [vmem:[#allocation9 + $0x8] sm:$0xff] %v2190
      %2207 = vst [vmem:[#allocation9 + $0x10] sm:$0xff] %v2191
      %2208 = vst [vmem:[#allocation9 + $0x18] sm:$0xff] %v2192
      %2209 = vst [vmem:[#allocation9 + $0x20] sm:$0xff] %v2193
      %2210 = vst [vmem:[#allocation9 + $0x28] sm:$0xff] %v2194
      %2211 = vst [vmem:[#allocation9 + $0x30] sm:$0xff] %v2195
      %2212 = vst [vmem:[#allocation9 + $0x38] sm:$0xff] %v2196
      %2213 = vst [vmem:[#allocation9 + $0x40] sm:$0xff] %v2197
      %2214 = vst [vmem:[#allocation9 + $0x48] sm:$0xff] %v2198
      %2215 = vst [vmem:[#allocation9 + $0x50] sm:$0xff] %v2199
      %2216 = vst [vmem:[#allocation9 + $0x58] sm:$0xff] %v2200
      %2217 = vst [vmem:[#allocation9 + $0x60] sm:$0xff] %v2201
      %2218 = vst [vmem:[#allocation9 + $0x68] sm:$0xff] %v2202
      %2219 = vst [vmem:[#allocation9 + $0x70] sm:$0xff] %v2203
      %2220 = vst [vmem:[#allocation9 + $0x78] sm:$0xff] %v2204
    $region37: #{tpu_custom_call.1} parent=1 // pred_fallthru
      _
    // Predicated region
    $region38: #{tpu_custom_call.1} parent=1 // pred_check
      _
    $region39: #{tpu_custom_call.1} parent=1 // pred_check_branch
      %2222 = sbr.rel (0) target = $region41
    $region40: #{tpu_custom_call.1} parent=1 // pred_region
      %2224 = vsyncadd [#allocation8], 0
      %s2225 = sshll.u32 [#allocation9], 4
      %s2226 = int_to_ptr.vmem [resolvable:$true] %s2225
      %s2227 = sshll.u32 %s4, 4
      %s2228 = int_to_ptr.hbm [resolvable:$true] %s2227
      %2233 = dma.vmem_to_hbm [thread:$0]  %s2226, 2048, %s2228, [#allocation8], 128, 128, 8
    $region41: #{tpu_custom_call.1} parent=1 // pred_fallthru
      _
    // Predicated region
    $region42: #{tpu_custom_call.1} parent=1 // pred_check
      _
    $region43: #{tpu_custom_call.1} parent=1 // pred_check_branch
      %2235 = sbr.rel (0) target = $region45
    $region44: #{tpu_custom_call.1} parent=1 // pred_region
      %2237 = dma.done [#allocation8], 2048
    $region45: #{tpu_custom_call.1} parent=1 // pred_fallthru
      _
    %2238 = vsyncpa [#allocation7], 1
    %2239 = vsyncpa [#allocation8], 1

</llo_original>
